<compile_context>
chip_gen: v5e
topology: v5e:2x2
jax: 0.10.0
libtpu: 0.0.40
codegen_flags: <defaults>
</compile_context>

<pallas_src>
import functools

import jax
import jax.numpy as jnp
from jax.experimental import pallas as pl
from jax.experimental.pallas import tpu as pltpu

EPS = 1e-5  # nn.BatchNorm2d default


# ----------------------------------------------------------------------------
# Host-side (trace-time) parameter helpers.
# ----------------------------------------------------------------------------
def _banded_weights(w_hwio, W, dtype):
    """HWIO [3,3,Cin,Cout] -> [3*W*Cin, W*Cout] banded weights, dh taps stacked along K.

    band[wi, wo] = 1 iff wi == wo + dw - 1 (folds the dw taps and the 'same'
    zero padding along W into the weights).  Row block dh pairs with the
    activation slab x[h + dh - 1].
    """
    Cin, Cout = w_hwio.shape[2], w_hwio.shape[3]
    mats = []
    for dh in range(3):
        m = 0.0
        for dw in range(3):
            band = jnp.eye(W, k=1 - dw, dtype=jnp.float32)
            m = m + jnp.kron(band, w_hwio[dh, dw].astype(jnp.float32))
        mats.append(m)
    return jnp.stack(mats).reshape(3 * W * Cin, W * Cout).astype(dtype)


def _bn_finalize(partials, gamma, beta, W, C, count):
    """Tiny finalize: [T, 2, W*C] partial sum/sumsq -> lane-tiled scale/shift [1, W*C]."""
    s = jnp.sum(partials[:, 0, :], axis=0).reshape(W, C).sum(axis=0)   # [C]
    ss = jnp.sum(partials[:, 1, :], axis=0).reshape(W, C).sum(axis=0)  # [C]
    mean = s / count
    var = ss / count - mean * mean                                     # biased (training BN)
    scale_c = gamma.astype(jnp.float32) * jax.lax.rsqrt(var + EPS)
    shift_c = beta.astype(jnp.float32) - mean * scale_c
    # lane layout is [w, c] with channel fastest -> tile per-channel vec across W groups
    return (jnp.tile(scale_c, W).reshape(1, W * C),
            jnp.tile(shift_c, W).reshape(1, W * C))


def _vmem_limit_bytes():
    """Generation-aware scoped-VMEM limit: 3/4 of physical, capped at 100 MiB."""
    try:
        phys = int(pltpu.get_tpu_info().vmem_capacity_bytes)
    except Exception:  # pragma: no cover - conservative fallback (v7x-sized)
        phys = 64 << 20
    return int(min(100 << 20, max(16 << 20, (phys * 3) // 4)))


# ----------------------------------------------------------------------------
# Kernels
# ----------------------------------------------------------------------------
def _make_conv_kernel(ipp, H, WCi, WCo, cdt, with_affine):
    """3x3 'same' conv over [ipp images x H rows] as ONE K=3*WCi matmul.

    with_affine=True additionally applies a per-channel affine (BN scale/shift
    from the previous phase) + ReLU to the input slab before the conv.
    Outputs: conv result tile and its [sum, sumsq] BN partials.
    """
    rows = ipp * H

    def taps(a):  # a: [rows, WCi] f32
        # per-image local row index (blocks hold whole images -> no modulo needed)
        h = jax.lax.broadcasted_iota(jnp.int32, (ipp, H, WCi), 1).reshape(rows, WCi)
        # a[h-1] / a[h+1] via XLU sublane rotation; zero the per-image boundary rows.
        up = jnp.where(h == 0, 0.0, pltpu.roll(a, 1, 0))
        dn = jnp.where(h == H - 1, 0.0, pltpu.roll(a, rows - 1, 0))
        return jnp.concatenate([up, a, dn], axis=-1)        # [rows, 3*WCi]

    def conv_and_stats(a, w_ref, y_ref, p_ref):
        acc = jnp.dot(taps(a).astype(cdt), w_ref[...],
                      preferred_element_type=jnp.float32)   # [rows, WCo] f32
        y_ref[...] = acc.astype(y_ref.dtype)
        s = jnp.sum(acc, axis=0, keepdims=True)
        ss = jnp.sum(acc * acc, axis=0, keepdims=True)
        p_ref[...] = jnp.concatenate([s, ss], axis=0).reshape(1, 2, WCo)

    if with_affine:
        def kernel(x_ref, s_ref, b_ref, w_ref, y_ref, p_ref):
            a = jnp.maximum(x_ref[...].astype(jnp.float32) * s_ref[...] + b_ref[...], 0.0)
            conv_and_stats(a, w_ref, y_ref, p_ref)
    else:
        def kernel(x_ref, w_ref, y_ref, p_ref):
            conv_and_stats(x_ref[...].astype(jnp.float32), w_ref, y_ref, p_ref)
    return kernel


def _bn_relu_kernel(y_ref, s_ref, b_ref, o_ref):
    o_ref[...] = jnp.maximum(y_ref[...] * s_ref[...] + b_ref[...], 0.0)


# ----------------------------------------------------------------------------
# Wrappers
# ----------------------------------------------------------------------------
@functools.partial(jax.jit, static_argnames=("compute_dtype", "images_per_program"))
def nested_block_nhwc(x_nhwc, skip_nhwc, params, compute_dtype=jnp.bfloat16,
                      images_per_program=None):
    """NestedBlock forward, activations kept channels-last end-to-end."""
    if skip_nhwc is not None:
        xin = jnp.concatenate([x_nhwc, skip_nhwc], axis=-1)
    else:
        xin = x_nhwc
    N, H, W, C1 = xin.shape
    Cout = params["w1"].shape[-1]
    WC1, WCo = W * C1, W * Cout
    assert H % 8 == 0, "H must be a multiple of 8 (per-image sublane alignment)"

    # Row-tile choice: whole images per program; target >=256 rows per matmul
    # where the batch allows it (v5e is happy from 128).
    if images_per_program is None:
        ipp = max(1, min(N, 256 // H))
        while N % ipp:
            ipp -= 1
    else:
        ipp = images_per_program
    assert N % ipp == 0, "images_per_program must divide N"
    num_tiles = N // ipp
    rows_pp = ipp * H

    # Activations stored in compute dtype (bf16 on the fast path) - no host pad.
    x2d = xin.astype(compute_dtype).reshape(N * H, WC1)
    wb1 = _banded_weights(params["w1"], W, compute_dtype)    # [3*WC1, WCo]
    wb2 = _banded_weights(params["w2"], W, compute_dtype)    # [3*WCo, WCo]
    # NOTE: conv biases b1/b2 intentionally not used - cancelled by training-mode BN.

    cp = pltpu.CompilerParams(dimension_semantics=("parallel",),
                              vmem_limit_bytes=_vmem_limit_bytes())

    x_spec = pl.BlockSpec((rows_pp, WC1), lambda i: (i, 0))
    row_spec = pl.BlockSpec((rows_pp, WCo), lambda i: (i, 0))
    part_spec = pl.BlockSpec((1, 2, WCo), lambda i: (i, 0, 0))
    vec_spec = pl.BlockSpec((1, WCo), lambda i: (0, 0))
    w1_spec = pl.BlockSpec((3 * WC1, WCo), lambda i: (0, 0))
    w2_spec = pl.BlockSpec((3 * WCo, WCo), lambda i: (0, 0))

    count = float(N * H * W)

    # ---- phase 1: conv1 + bn1 partial statistics -------------------------------
    y1_raw, part1 = pl.pallas_call(
        _make_conv_kernel(ipp, H, WC1, WCo, compute_dtype, with_affine=False),
        out_shape=(jax.ShapeDtypeStruct((N * H, WCo), compute_dtype),
                   jax.ShapeDtypeStruct((num_tiles, 2, WCo), jnp.float32)),
        grid=(num_tiles,),
        in_specs=[x_spec, w1_spec],
        out_specs=(row_spec, part_spec),
        compiler_params=cp,
    )(x2d, wb1)

    scale1, shift1 = _bn_finalize(part1, params["g1"], params["be1"], W, Cout, count)

    # ---- phase 2: bn1-normalize + ReLU + conv2 + bn2 partials -------------------
    y2_raw, part2 = pl.pallas_call(
        _make_conv_kernel(ipp, H, WCo, WCo, compute_dtype, with_affine=True),
        out_shape=(jax.ShapeDtypeStruct((N * H, WCo), jnp.float32),
                   jax.ShapeDtypeStruct((num_tiles, 2, WCo), jnp.float32)),
        grid=(num_tiles,),
        in_specs=[row_spec, vec_spec, vec_spec, w2_spec],
        out_specs=(row_spec, part_spec),
        compiler_params=cp,
    )(y1_raw, scale1, shift1, wb2)

    scale2, shift2 = _bn_finalize(part2, params["g2"], params["be2"], W, Cout, count)

    # ---- phase 3: bn2-normalize + ReLU (lane-dense elementwise) -----------------
    out2d = pl.pallas_call(
        _bn_relu_kernel,
        out_shape=jax.ShapeDtypeStruct((N * H, WCo), jnp.float32),
        grid=(num_tiles,),
        in_specs=[row_spec, vec_spec, vec_spec],
        out_specs=row_spec,
        compiler_params=cp,
    )(y2_raw, scale2, shift2)

    return out2d.reshape(N, H, W, Cout)


def nested_block(x_nchw, skip_nchw, params, compute_dtype=jnp.bfloat16,
                 images_per_program=None):
    """PyTorch-layout (NCHW) adapter around the NHWC pipeline."""
    x = jnp.transpose(x_nchw, (0, 2, 3, 1))
    skip = None if skip_nchw is None else jnp.transpose(skip_nchw, (0, 2, 3, 1))
    out = nested_block_nhwc(x, skip, params, compute_dtype=compute_dtype,
                            images_per_program=images_per_program)
    return jnp.transpose(out, (0, 3, 1, 2))


# ----------------------------------------------------------------------------
# Pure-JAX reference (PyTorch semantics) and test harness
# ----------------------------------------------------------------------------
def _reference(x_nchw, skip_nchw, params):
    xin = jnp.concatenate([x_nchw, skip_nchw], axis=1)
    x = jnp.transpose(xin, (0, 2, 3, 1)).astype(jnp.float32)

    def conv_bn_relu(x, w, b, g, be):
        y = jax.lax.conv_general_dilated(
            x, w, window_strides=(1, 1), padding="SAME",
            dimension_numbers=("NHWC", "HWIO", "NHWC")) + b
        mean = jnp.mean(y, axis=(0, 1, 2), keepdims=True)
        var = jnp.mean((y - mean) ** 2, axis=(0, 1, 2), keepdims=True)
        return jnp.maximum((y - mean) * jax.lax.rsqrt(var + EPS) * g + be, 0.0)

    y = conv_bn_relu(x, params["w1"], params["b1"], params["g1"], params["be1"])
    y = conv_bn_relu(y, params["w2"], params["b2"], params["g2"], params["be2"])
    return jnp.transpose(y, (0, 3, 1, 2))


def init_params(key, c_in_total, c_out):
    ks = jax.random.split(key, 8)
    # conv weights stored in HWIO layout (3, 3, Cin, Cout)
    return {
        "w1": 0.1 * jax.random.normal(ks[0], (3, 3, c_in_total, c_out), jnp.float32),
        "b1": 0.05 * jax.random.normal(ks[1], (c_out,), jnp.float32),
        "g1": 1.0 + 0.1 * jax.random.normal(ks[2], (c_out,), jnp.float32),
        "be1": 0.05 * jax.random.normal(ks[3], (c_out,), jnp.float32),
        "w2": 0.1 * jax.random.normal(ks[4], (3, 3, c_out, c_out), jnp.float32),
        "b2": 0.05 * jax.random.normal(ks[5], (c_out,), jnp.float32),
        "g2": 1.0 + 0.1 * jax.random.normal(ks[6], (c_out,), jnp.float32),
        "be2": 0.05 * jax.random.normal(ks[7], (c_out,), jnp.float32),
    }


if __name__ == "__main__":
    # NestedBlock(in_channels=4, mid_channels=4, out_channels=8)
    in_channels, mid_channels, out_channels = 4, 4, 8
    N, H, W = 2, 16, 16          # W * out_channels = 128 -> one full lane row

    key = jax.random.PRNGKey(0)
    kx, ks, kp = jax.random.split(key, 3)
    x = jax.random.normal(kx, (N, in_channels, H, W), jnp.float32)
    skip = jax.random.normal(ks, (N, mid_channels, H, W), jnp.float32)
    params = init_params(kp, in_channels + mid_channels, out_channels)

    ref = jax.block_until_ready(_reference(x, skip, params))

    # Exactness path: f32 MXU inputs, forced 2-program grid (exercises the
    # cross-tile BN partial-sum reduction and the parallel row grid).
    out_f32 = jax.block_until_ready(
        nested_block(x, skip, params, compute_dtype=jnp.float32, images_per_program=1))
    assert out_f32.shape == (N, out_channels, H, W)
    assert jnp.allclose(out_f32, ref, atol=2e-3, rtol=2e-3), "f32 mismatch"

    # Performance path: bf16 activations/weights in HBM, f32 accumulation & BN
    # statistics, auto row-tile size.
    out_bf16 = jax.block_until_ready(
        nested_block(x, skip, params, compute_dtype=jnp.bfloat16))
    assert out_bf16.shape == (N, out_channels, H, W)
    assert jnp.allclose(out_bf16, ref, atol=5e-2, rtol=5e-2), "bf16 mismatch"

    print("KERNEL_OK")
</pallas_src>

<mosaic_0001>
module attributes {stable_mosaic.version = 11 : i64} {
  func.func @kernel(%arg0: i32, %arg1: memref<16x128xf32, #tpu.memory_space<vmem>>, %arg2: memref<384x128xf32, #tpu.memory_space<vmem>>, %arg3: memref<16x128xf32, #tpu.memory_space<vmem>>, %arg4: memref<1x2x128xf32, #tpu.memory_space<vmem>>) attributes {dimension_semantics = [#tpu.dimension_semantics<parallel>], iteration_bounds = array<i64: 2>, scalar_prefetch = 0 : i64, scratch_operands = 0 : i64, tpu.core_type = #tpu.core_type<tc>, window_params = [{transform_indices = @transform_0, window_bounds = array<i64: 16, 128>}, {pipeline_mode = #tpu.pipeline_mode<synchronous>, transform_indices = @transform_1, window_bounds = array<i64: 384, 128>}, {transform_indices = @transform_2, window_bounds = array<i64: 16, 128>}, {transform_indices = @transform_3, window_bounds = array<i64: 1, 2, 128>}]} {
    %c0 = arith.constant 0 : index
    %c0_0 = arith.constant 0 : index
    %0 = vector.load %arg1[%c0, %c0_0] : memref<16x128xf32, #tpu.memory_space<vmem>>, vector<16x128xf32>
    %1 = tpu.iota {dimensions = array<i32: 1>} : vector<1x16x128xi32>
    %2 = vector.shape_cast %1 : vector<1x16x128xi32> to vector<16x128xi32>
    %c0_i32 = arith.constant 0 : i32
    %3 = vector.broadcast %c0_i32 : i32 to vector<16x128xi32>
    %4 = arith.cmpi eq, %2, %3 : vector<16x128xi32>
    %c1_i32 = arith.constant 1 : i32
    %5 = tpu.dynamic_rotate %0 by %c1_i32 dim 0 : vector<16x128xf32>, i32 -> vector<16x128xf32>
    %cst = arith.constant 0.000000e+00 : f32
    %6 = vector.broadcast %cst : f32 to vector<16x128xf32>
    %7 = arith.select %4, %6, %5 : vector<16x128xi1>, vector<16x128xf32>
    %c15_i32 = arith.constant 15 : i32
    %8 = vector.broadcast %c15_i32 : i32 to vector<16x128xi32>
    %9 = arith.cmpi eq, %2, %8 : vector<16x128xi32>
    %c15_i32_1 = arith.constant 15 : i32
    %10 = tpu.dynamic_rotate %0 by %c15_i32_1 dim 0 : vector<16x128xf32>, i32 -> vector<16x128xf32>
    %cst_2 = arith.constant 0.000000e+00 : f32
    %11 = vector.broadcast %cst_2 : f32 to vector<16x128xf32>
    %12 = arith.select %9, %11, %10 : vector<16x128xi1>, vector<16x128xf32>
    %13 = tpu.concatenate %7, %0, %12 in 1 : vector<16x128xf32>, vector<16x128xf32>, vector<16x128xf32> -> vector<16x384xf32>
    %c0_3 = arith.constant 0 : index
    %c0_4 = arith.constant 0 : index
    %14 = vector.load %arg2[%c0_3, %c0_4] : memref<384x128xf32, #tpu.memory_space<vmem>>, vector<384x128xf32>
    %cst_5 = arith.constant dense<0.000000e+00> : vector<16x128xf32>
    %15 = tpu.matmul %13, %14, %cst_5 {dimension_numbers = #tpu.dot_dimension_numbers<[1], [0], [0], [1], [0, 0, 1, 1], [], []>} : vector<16x384xf32>, vector<384x128xf32>, vector<16x128xf32> -> vector<16x128xf32>
    %c0_6 = arith.constant 0 : index
    %c0_7 = arith.constant 0 : index
    %16 = vector.load %arg3[%c0_6, %c0_7] : memref<16x128xf32, #tpu.memory_space<vmem>>, vector<16x128xf32>
    tpu.vector_store %arg3[%c0_6, %c0_7], %15 {strides = array<i32>} : memref<16x128xf32, #tpu.memory_space<vmem>>, vector<16x128xf32>,
    %cst_8 = arith.constant dense<0.000000e+00> : vector<128xf32>
    %17 = vector.multi_reduction <add>, %15, %cst_8 [0] : vector<16x128xf32> to vector<128xf32>
    %18 = vector.shape_cast %17 : vector<128xf32> to vector<1x128xf32>
    %19 = arith.mulf %15, %15 : vector<16x128xf32>
    %cst_9 = arith.constant dense<0.000000e+00> : vector<128xf32>
    %20 = vector.multi_reduction <add>, %19, %cst_9 [0] : vector<16x128xf32> to vector<128xf32>
    %21 = vector.shape_cast %20 : vector<128xf32> to vector<1x128xf32>
    %22 = tpu.concatenate %18, %21 in 0 : vector<1x128xf32>, vector<1x128xf32> -> vector<2x128xf32>
    %23 = vector.shape_cast %22 : vector<2x128xf32> to vector<1x2x128xf32>
    %c0_10 = arith.constant 0 : index
    %c0_11 = arith.constant 0 : index
    %c0_12 = arith.constant 0 : index
    %24 = vector.load %arg4[%c0_10, %c0_11, %c0_12] : memref<1x2x128xf32, #tpu.memory_space<vmem>>, vector<1x2x128xf32>
    tpu.vector_store %arg4[%c0_10, %c0_11, %c0_12], %23 {strides = array<i32>} : memref<1x2x128xf32, #tpu.memory_space<vmem>>, vector<1x2x128xf32>,
    return
  }
  func.func @transform_0(%arg0: i32) -> (i32, i32) {
    %c0_i32 = arith.constant 0 : i32
    %c0_i32_0 = arith.constant 0 : i32
    return %arg0, %c0_i32 : i32, i32
  }
  func.func @transform_1(%arg0: i32) -> (i32, i32) {
    %c0_i32 = arith.constant 0 : i32
    %c0_i32_0 = arith.constant 0 : i32
    %c0_i32_1 = arith.constant 0 : i32
    return %c0_i32, %c0_i32_0 : i32, i32
  }
  func.func @transform_2(%arg0: i32) -> (i32, i32) {
    %c0_i32 = arith.constant 0 : i32
    %c0_i32_0 = arith.constant 0 : i32
    return %arg0, %c0_i32 : i32, i32
  }
  func.func @transform_3(%arg0: i32) -> (i32, i32, i32) {
    %c0_i32 = arith.constant 0 : i32
    %c0_i32_0 = arith.constant 0 : i32
    %c0_i32_1 = arith.constant 0 : i32
    return %arg0, %c0_i32, %c0_i32_0 : i32, i32, i32
  }
}

module attributes {stable_mosaic.version = 11 : i64} {
  func.func @_bn_relu_kernel(%arg0: i32, %arg1: memref<16x128xf32, #tpu.memory_space<vmem>>, %arg2: memref<1x128xf32, #tpu.memory_space<vmem>>, %arg3: memref<1x128xf32, #tpu.memory_space<vmem>>, %arg4: memref<16x128xf32, #tpu.memory_space<vmem>>) attributes {dimension_semantics = [#tpu.dimension_semantics<parallel>], iteration_bounds = array<i64: 2>, scalar_prefetch = 0 : i64, scratch_operands = 0 : i64, tpu.core_type = #tpu.core_type<tc>, window_params = [{transform_indices = @transform_0, window_bounds = array<i64: 16, 128>}, {pipeline_mode = #tpu.pipeline_mode<synchronous>, transform_indices = @transform_1, window_bounds = array<i64: 1, 128>}, {pipeline_mode = #tpu.pipeline_mode<synchronous>, transform_indices = @transform_2, window_bounds = array<i64: 1, 128>}, {transform_indices = @transform_3, window_bounds = array<i64: 16, 128>}]} {
    %c0 = arith.constant 0 : index
    %c0_0 = arith.constant 0 : index
    %0 = vector.load %arg1[%c0, %c0_0] : memref<16x128xf32, #tpu.memory_space<vmem>>, vector<16x128xf32>
    %c0_1 = arith.constant 0 : index
    %c0_2 = arith.constant 0 : index
    %1 = vector.load %arg2[%c0_1, %c0_2] : memref<1x128xf32, #tpu.memory_space<vmem>>, vector<1x128xf32>
    %2 = vector.broadcast %1 : vector<1x128xf32> to vector<16x128xf32>
    %3 = arith.mulf %0, %2 : vector<16x128xf32>
    %c0_3 = arith.constant 0 : index
    %c0_4 = arith.constant 0 : index
    %4 = vector.load %arg3[%c0_3, %c0_4] : memref<1x128xf32, #tpu.memory_space<vmem>>, vector<1x128xf32>
    %5 = vector.broadcast %4 : vector<1x128xf32> to vector<16x128xf32>
    %6 = arith.addf %3, %5 : vector<16x128xf32>
    %cst = arith.constant 0.000000e+00 : f32
    %7 = vector.broadcast %cst : f32 to vector<16x128xf32>
    %8 = arith.maximumf %6, %7 : vector<16x128xf32>
    %c0_5 = arith.constant 0 : index
    %c0_6 = arith.constant 0 : index
    %9 = vector.load %arg4[%c0_5, %c0_6] : memref<16x128xf32, #tpu.memory_space<vmem>>, vector<16x128xf32>
    tpu.vector_store %arg4[%c0_5, %c0_6], %8 {strides = array<i32>} : memref<16x128xf32, #tpu.memory_space<vmem>>, vector<16x128xf32>,
    return
  }
  func.func @transform_0(%arg0: i32) -> (i32, i32) {
    %c0_i32 = arith.constant 0 : i32
    %c0_i32_0 = arith.constant 0 : i32
    return %arg0, %c0_i32 : i32, i32
  }
  func.func @transform_1(%arg0: i32) -> (i32, i32) {
    %c0_i32 = arith.constant 0 : i32
    %c0_i32_0 = arith.constant 0 : i32
    %c0_i32_1 = arith.constant 0 : i32
    return %c0_i32, %c0_i32_0 : i32, i32
  }
  func.func @transform_2(%arg0: i32) -> (i32, i32) {
    %c0_i32 = arith.constant 0 : i32
    %c0_i32_0 = arith.constant 0 : i32
    %c0_i32_1 = arith.constant 0 : i32
    return %c0_i32, %c0_i32_0 : i32, i32
  }
  func.func @transform_3(%arg0: i32) -> (i32, i32) {
    %c0_i32 = arith.constant 0 : i32
    %c0_i32_0 = arith.constant 0 : i32
    return %arg0, %c0_i32 : i32, i32
  }
}

module attributes {stable_mosaic.version = 11 : i64} {
  func.func @kernel(%arg0: i32, %arg1: memref<16x128xf32, #tpu.memory_space<vmem>>, %arg2: memref<1x128xf32, #tpu.memory_space<vmem>>, %arg3: memref<1x128xf32, #tpu.memory_space<vmem>>, %arg4: memref<384x128xf32, #tpu.memory_space<vmem>>, %arg5: memref<16x128xf32, #tpu.memory_space<vmem>>, %arg6: memref<1x2x128xf32, #tpu.memory_space<vmem>>) attributes {dimension_semantics = [#tpu.dimension_semantics<parallel>], iteration_bounds = array<i64: 2>, scalar_prefetch = 0 : i64, scratch_operands = 0 : i64, tpu.core_type = #tpu.core_type<tc>, window_params = [{transform_indices = @transform_0, window_bounds = array<i64: 16, 128>}, {pipeline_mode = #tpu.pipeline_mode<synchronous>, transform_indices = @transform_1, window_bounds = array<i64: 1, 128>}, {pipeline_mode = #tpu.pipeline_mode<synchronous>, transform_indices = @transform_2, window_bounds = array<i64: 1, 128>}, {pipeline_mode = #tpu.pipeline_mode<synchronous>, transform_indices = @transform_3, window_bounds = array<i64: 384, 128>}, {transform_indices = @transform_4, window_bounds = array<i64: 16, 128>}, {transform_indices = @transform_5, window_bounds = array<i64: 1, 2, 128>}]} {
    %c0 = arith.constant 0 : index
    %c0_0 = arith.constant 0 : index
    %0 = vector.load %arg1[%c0, %c0_0] : memref<16x128xf32, #tpu.memory_space<vmem>>, vector<16x128xf32>
    %c0_1 = arith.constant 0 : index
    %c0_2 = arith.constant 0 : index
    %1 = vector.load %arg2[%c0_1, %c0_2] : memref<1x128xf32, #tpu.memory_space<vmem>>, vector<1x128xf32>
    %2 = vector.broadcast %1 : vector<1x128xf32> to vector<16x128xf32>
    %3 = arith.mulf %0, %2 : vector<16x128xf32>
    %c0_3 = arith.constant 0 : index
    %c0_4 = arith.constant 0 : index
    %4 = vector.load %arg3[%c0_3, %c0_4] : memref<1x128xf32, #tpu.memory_space<vmem>>, vector<1x128xf32>
    %5 = vector.broadcast %4 : vector<1x128xf32> to vector<16x128xf32>
    %6 = arith.addf %3, %5 : vector<16x128xf32>
    %cst = arith.constant 0.000000e+00 : f32
    %7 = vector.broadcast %cst : f32 to vector<16x128xf32>
    %8 = arith.maximumf %6, %7 : vector<16x128xf32>
    %9 = tpu.iota {dimensions = array<i32: 1>} : vector<1x16x128xi32>
    %10 = vector.shape_cast %9 : vector<1x16x128xi32> to vector<16x128xi32>
    %c0_i32 = arith.constant 0 : i32
    %11 = vector.broadcast %c0_i32 : i32 to vector<16x128xi32>
    %12 = arith.cmpi eq, %10, %11 : vector<16x128xi32>
    %c1_i32 = arith.constant 1 : i32
    %13 = tpu.dynamic_rotate %8 by %c1_i32 dim 0 : vector<16x128xf32>, i32 -> vector<16x128xf32>
    %cst_5 = arith.constant 0.000000e+00 : f32
    %14 = vector.broadcast %cst_5 : f32 to vector<16x128xf32>
    %15 = arith.select %12, %14, %13 : vector<16x128xi1>, vector<16x128xf32>
    %c15_i32 = arith.constant 15 : i32
    %16 = vector.broadcast %c15_i32 : i32 to vector<16x128xi32>
    %17 = arith.cmpi eq, %10, %16 : vector<16x128xi32>
    %c15_i32_6 = arith.constant 15 : i32
    %18 = tpu.dynamic_rotate %8 by %c15_i32_6 dim 0 : vector<16x128xf32>, i32 -> vector<16x128xf32>
    %cst_7 = arith.constant 0.000000e+00 : f32
    %19 = vector.broadcast %cst_7 : f32 to vector<16x128xf32>
    %20 = arith.select %17, %19, %18 : vector<16x128xi1>, vector<16x128xf32>
    %21 = tpu.concatenate %15, %8, %20 in 1 : vector<16x128xf32>, vector<16x128xf32>, vector<16x128xf32> -> vector<16x384xf32>
    %c0_8 = arith.constant 0 : index
    %c0_9 = arith.constant 0 : index
    %22 = vector.load %arg4[%c0_8, %c0_9] : memref<384x128xf32, #tpu.memory_space<vmem>>, vector<384x128xf32>
    %cst_10 = arith.constant dense<0.000000e+00> : vector<16x128xf32>
    %23 = tpu.matmul %21, %22, %cst_10 {dimension_numbers = #tpu.dot_dimension_numbers<[1], [0], [0], [1], [0, 0, 1, 1], [], []>} : vector<16x384xf32>, vector<384x128xf32>, vector<16x128xf32> -> vector<16x128xf32>
    %c0_11 = arith.constant 0 : index
    %c0_12 = arith.constant 0 : index
    %24 = vector.load %arg5[%c0_11, %c0_12] : memref<16x128xf32, #tpu.memory_space<vmem>>, vector<16x128xf32>
    tpu.vector_store %arg5[%c0_11, %c0_12], %23 {strides = array<i32>} : memref<16x128xf32, #tpu.memory_space<vmem>>, vector<16x128xf32>,
    %cst_13 = arith.constant dense<0.000000e+00> : vector<128xf32>
    %25 = vector.multi_reduction <add>, %23, %cst_13 [0] : vector<16x128xf32> to vector<128xf32>
    %26 = vector.shape_cast %25 : vector<128xf32> to vector<1x128xf32>
    %27 = arith.mulf %23, %23 : vector<16x128xf32>
    %cst_14 = arith.constant dense<0.000000e+00> : vector<128xf32>
    %28 = vector.multi_reduction <add>, %27, %cst_14 [0] : vector<16x128xf32> to vector<128xf32>
    %29 = vector.shape_cast %28 : vector<128xf32> to vector<1x128xf32>
    %30 = tpu.concatenate %26, %29 in 0 : vector<1x128xf32>, vector<1x128xf32> -> vector<2x128xf32>
    %31 = vector.shape_cast %30 : vector<2x128xf32> to vector<1x2x128xf32>
    %c0_15 = arith.constant 0 : index
    %c0_16 = arith.constant 0 : index
    %c0_17 = arith.constant 0 : index
    %32 = vector.load %arg6[%c0_15, %c0_16, %c0_17] : memref<1x2x128xf32, #tpu.memory_space<vmem>>, vector<1x2x128xf32>
    tpu.vector_store %arg6[%c0_15, %c0_16, %c0_17], %31 {strides = array<i32>} : memref<1x2x128xf32, #tpu.memory_space<vmem>>, vector<1x2x128xf32>,
    return
  }
  func.func @transform_0(%arg0: i32) -> (i32, i32) {
    %c0_i32 = arith.constant 0 : i32
    %c0_i32_0 = arith.constant 0 : i32
    return %arg0, %c0_i32 : i32, i32
  }
  func.func @transform_1(%arg0: i32) -> (i32, i32) {
    %c0_i32 = arith.constant 0 : i32
    %c0_i32_0 = arith.constant 0 : i32
    %c0_i32_1 = arith.constant 0 : i32
    return %c0_i32, %c0_i32_0 : i32, i32
  }
  func.func @transform_2(%arg0: i32) -> (i32, i32) {
    %c0_i32 = arith.constant 0 : i32
    %c0_i32_0 = arith.constant 0 : i32
    %c0_i32_1 = arith.constant 0 : i32
    return %c0_i32, %c0_i32_0 : i32, i32
  }
  func.func @transform_3(%arg0: i32) -> (i32, i32) {
    %c0_i32 = arith.constant 0 : i32
    %c0_i32_0 = arith.constant 0 : i32
    %c0_i32_1 = arith.constant 0 : i32
    return %c0_i32, %c0_i32_0 : i32, i32
  }
  func.func @transform_4(%arg0: i32) -> (i32, i32) {
    %c0_i32 = arith.constant 0 : i32
    %c0_i32_0 = arith.constant 0 : i32
    return %arg0, %c0_i32 : i32, i32
  }
  func.func @transform_5(%arg0: i32) -> (i32, i32, i32) {
    %c0_i32 = arith.constant 0 : i32
    %c0_i32_0 = arith.constant 0 : i32
    %c0_i32_1 = arith.constant 0 : i32
    return %arg0, %c0_i32, %c0_i32_0 : i32, i32, i32
  }
}

</mosaic_0001>

<llo_original>
// kernel: nested_block_nhwc.3
$region0: #{nested_block_nhwc.3}
  #allocation0 [shape = 'u32[]', space=smem, size = 0x4, offset = 0x4, fixed_abs, tag = 'smem constant byte address 0x4 - core index']
  #allocation1 [shape = 'u32[72,128]{1,0:T(1,128)}', space=vmem, size = 0x9000, scoped, tag = 'internal scratch']
  %s0 = inlined_call_operand.vmem [shape: f32[32,128], index: 0, kind: input, shape index: {}]
  %s1 = inlined_call_operand.vmem [shape: f32[384,128], index: 1, kind: input, shape index: {}]
  %s2 = inlined_call_operand.vmem [shape: f32[32,128], index: 2, kind: output, shape index: {0}]
  %s3 = inlined_call_operand.vmem [shape: f32[2,2,128], index: 3, kind: output, shape index: {1}]
  %4 = xla_tuple %s2, %s3
  %s5 = sld [smem:[#allocation0]]
  $region49: #{nested_block_nhwc.3} parent=0
    _
  %s7 = ssub.s32 1, %s5
  %s8 = scalar_select 0, %s7, %s5
  loop: start=0, step=1, limit=4
  $region2: #{nested_block_nhwc.3} parent=0 // loop_pre_header
    _
  $region3: #{nested_block_nhwc.3} parent=0 // loop_header
    %s10 = sphi 0, %s14
    %p11 = scmp.ge.s32.totalorder %s10, 4
    %s20 = sphi 0, %s22
    %s23 = sphi 0, %s20
    %s24 = sphi 0, %s23
    %s40 = sphi 0, %s24
    %s44 = sphi 0, %s44
    %s46 = sphi 0, %s44
    %s47 = sphi 0, %s46
    %s61 = sphi 0, %s47
    %s67 = sphi 0, %s69
    %s70 = sphi 0, %s67
    %s71 = sphi 0, %s70
    %s87 = sphi 0, %s71
    %s93 = sphi 0, %s95
    %s96 = sphi 0, %s93
    %s97 = sphi 0, %s96
    %s113 = sphi 0, %s97
  $region4: #{nested_block_nhwc.3} parent=0 // loop_header_branch
    %13 = sbr.rel (%p11) target = $region8
  $region5: #{nested_block_nhwc.3} parent=0 // loop_body
    %s15 = ssub.s32 %s10, 1
    %s16 = ssub.s32 %s10, 2
    %s17 = sadd.s32 %s10, 1
    %s18 = ssub.s32 %s10, %s17
    %p19 = scmp.eq.s32.totalorder %s18, 0
    %s21 = sadd.s32 %s20, 1
    %s22 = scalar_select %p19, %s20, %s21
    %p25 = pneg %p19
    %p26 = scmp.eq.s32.totalorder %s10, 1
    %p27 = por %p25, %p26
    %p28 = scmp.ne.s32.totalorder %s20, %s23
    %p29 = scmp.eq.s32.totalorder %s10, 0
    %p30 = por %p28, %p29
    %p31 = scmp.ne.s32.totalorder %s20, %s23
    %p32 = scmp.eq.s32.totalorder %s15, 1
    %p33 = por %p31, %p32
    %p34 = scmp.ne.s32.totalorder %s23, %s24
    %p35 = scmp.eq.s32.totalorder %s15, 0
    %p36 = por %p34, %p35
    %p37 = scmp.ne.s32.totalorder %s23, %s24
    %p38 = scmp.eq.s32.totalorder %s16, 1
    %p39 = por %p37, %p38
    %p41 = scmp.ne.s32.totalorder %s24, %s40
    %p42 = scmp.eq.s32.totalorder %s16, 0
    %p43 = por %p41, %p42
    %s45 = sadd.s32 %s44, 1
    %p48 = scmp.eq.s32.totalorder %s10, 1
    %p49 = scmp.ne.s32.totalorder %s44, %s46
    %p50 = scmp.eq.s32.totalorder %s10, 0
    %p51 = por %p49, %p50
    %p52 = scmp.ne.s32.totalorder %s44, %s46
    %p53 = scmp.eq.s32.totalorder %s15, 1
    %p54 = por %p52, %p53
    %p55 = scmp.ne.s32.totalorder %s46, %s47
    %p56 = scmp.eq.s32.totalorder %s15, 0
    %p57 = por %p55, %p56
    %p58 = scmp.ne.s32.totalorder %s46, %s47
    %p59 = scmp.eq.s32.totalorder %s16, 1
    %p60 = por %p58, %p59
    %p62 = scmp.ne.s32.totalorder %s47, %s61
    %p63 = scmp.eq.s32.totalorder %s16, 0
    %p64 = por %p62, %p63
    %s65 = ssub.s32 %s10, %s17
    %p66 = scmp.eq.s32.totalorder %s65, 0
    %s68 = sadd.s32 %s67, 1
    %s69 = scalar_select %p66, %s67, %s68
    %p72 = pneg %p66
    %p73 = scmp.eq.s32.totalorder %s10, 1
    %p74 = por %p72, %p73
    %p75 = scmp.ne.s32.totalorder %s67, %s70
    %p76 = scmp.eq.s32.totalorder %s10, 0
    %p77 = por %p75, %p76
    %p78 = scmp.ne.s32.totalorder %s67, %s70
    %p79 = scmp.eq.s32.totalorder %s15, 1
    %p80 = por %p78, %p79
    %p81 = scmp.ne.s32.totalorder %s70, %s71
    %p82 = scmp.eq.s32.totalorder %s15, 0
    %p83 = por %p81, %p82
    %p84 = scmp.ne.s32.totalorder %s70, %s71
    %p85 = scmp.eq.s32.totalorder %s16, 1
    %p86 = por %p84, %p85
    %p88 = scmp.ne.s32.totalorder %s71, %s87
    %p89 = scmp.eq.s32.totalorder %s16, 0
    %p90 = por %p88, %p89
    %s91 = ssub.s32 %s10, %s17
    %p92 = scmp.eq.s32.totalorder %s91, 0
    %s94 = sadd.s32 %s93, 1
    %s95 = scalar_select %p92, %s93, %s94
    %p98 = pneg %p92
    %p99 = scmp.eq.s32.totalorder %s10, 1
    %p100 = por %p98, %p99
    %p101 = scmp.ne.s32.totalorder %s93, %s96
    %p102 = scmp.eq.s32.totalorder %s10, 0
    %p103 = por %p101, %p102
    %p104 = scmp.ne.s32.totalorder %s93, %s96
    %p105 = scmp.eq.s32.totalorder %s15, 1
    %p106 = por %p104, %p105
    %p107 = scmp.ne.s32.totalorder %s96, %s97
    %p108 = scmp.eq.s32.totalorder %s15, 0
    %p109 = por %p107, %p108
    %p110 = scmp.ne.s32.totalorder %s96, %s97
    %p111 = scmp.eq.s32.totalorder %s16, 1
    %p112 = por %p110, %p111
    %p114 = scmp.ne.s32.totalorder %s97, %s113
    %p115 = scmp.eq.s32.totalorder %s16, 0
    %p116 = por %p114, %p115
    %p117 = scmp.le.s32.totalorder 1, %s10
    %p118 = scmp.lt.s32.totalorder %s10, 3
    %p119 = pnand %p117, %p118
    %p120 = pneg %p119
    // Predicated region
    $region9: #{nested_block_nhwc.3} parent=5 // pred_check
      _
    $region10: #{nested_block_nhwc.3} parent=5 // pred_check_branch
      %122 = sbr.rel (%p119) target = $region12
    $region11: #{nested_block_nhwc.3} parent=5 // pred_region
      %s123 = ssub.s32 %s10, 1
      // Predicated region
      $region13: #{nested_block_nhwc.3} parent=11 // pred_check
        %p124 = pneg %p57
      $region14: #{nested_block_nhwc.3} parent=11 // pred_check_branch
        %126 = sbr.rel (%p124) target = $region16
      $region15: #{nested_block_nhwc.3} parent=11 // pred_region
        _
      $region16: #{nested_block_nhwc.3} parent=11 // pred_fallthru
        _
    $region12: #{nested_block_nhwc.3} parent=5 // pred_fallthru
      _
    %p127 = scmp.lt.s32.totalorder %s10, 2
    // Predicated region
    $region17: #{nested_block_nhwc.3} parent=5 // pred_check
      %p128 = pneg %p127
    $region18: #{nested_block_nhwc.3} parent=5 // pred_check_branch
      %130 = sbr.rel (%p128) target = $region20
    $region19: #{nested_block_nhwc.3} parent=5 // pred_region
      // Predicated region
      $region21: #{nested_block_nhwc.3} parent=19 // pred_check
        %p131 = pneg %p30
      $region22: #{nested_block_nhwc.3} parent=19 // pred_check_branch
        %133 = sbr.rel (%p131) target = $region24
      $region23: #{nested_block_nhwc.3} parent=19 // pred_region
        %s134 = smul.u32 2, %s10
        %p135 = scmp.lt.s32.totalorder %s134, 3
        %s136 = scalar_select %p135, %s134, 3
        %s137 = smul.addr %s136, 8
        %s138 = scalar_lea.vmem %s0, %s137
        %s139 = smul.u32 2, %s10
      $region24: #{nested_block_nhwc.3} parent=19 // pred_fallthru
        _
    $region20: #{nested_block_nhwc.3} parent=5 // pred_fallthru
      _
    %p140 = scmp.le.s32.totalorder 1, %s10
    %p141 = scmp.lt.s32.totalorder %s10, 3
    %p142 = pnand %p140, %p141
    %p143 = pneg %p142
    // Predicated region
    $region25: #{nested_block_nhwc.3} parent=5 // pred_check
      _
    $region26: #{nested_block_nhwc.3} parent=5 // pred_check_branch
      %145 = sbr.rel (%p142) target = $region28
    $region27: #{nested_block_nhwc.3} parent=5 // pred_region
      %s146 = ssub.s32 %s10, 1
      %s147 = smul.u32 2, %s15
      %p148 = scmp.lt.s32.totalorder %s147, 3
      %s149 = scalar_select %p148, %s147, 3
      %s150 = smul.addr %s149, 8
      %s151 = scalar_lea.vmem %s0, %s150
      %p152 = pneg %p36
      %p153 = pneg %p33
      %p154 = pneg %p57
      %p155 = pneg %p54
      %p156 = pneg %p83
      %p157 = pneg %p80
      %s158 = smul.u32 2, %s15
      %p159 = scmp.lt.s32.totalorder %s158, 3
      %s160 = scalar_select %p159, %s158, 3
      %s161 = smul.addr %s160, 8
      %s162 = scalar_lea.vmem %s2, %s161
      %p163 = pneg %p109
      %p164 = pneg %p106
      %p165 = scmp.lt.s32.totalorder %s15, 1
      %s166 = scalar_select %p165, %s15, 1
      %s167 = smul.addr %s166, 2
      %s168 = scalar_lea.vmem %s3, %s167
      %s169 = smul.u32 2, %s15
      %p170 = scmp.lt.s32.totalorder %s169, 3
      %s171 = scalar_select %p170, %s169, 3
      %s172 = smul.addr %s171, 8
      %s173 = scalar_lea.vmem %s0, %s172
      %s174 = smul.u32 2, %s15
      %s175 = smul.u32 2, %s15
      %p176 = scmp.lt.s32.totalorder %s175, 3
      %s177 = scalar_select %p176, %s175, 3
      %s178 = smul.addr %s177, 8
      %s179 = scalar_lea.vmem %s2, %s178
      %s180 = smul.u32 2, %s15
      %p181 = scmp.lt.s32.totalorder %s15, 1
      %s182 = scalar_select %p181, %s15, 1
      %s183 = smul.addr %s182, 2
      %s184 = scalar_lea.vmem %s3, %s183
      %v185 = vld [vmem:[%s173] sm:$0xff]
      %v186 = vld [vmem:[%s173 + $0x8] sm:$0xff]
      %v187 = vlaneseq
      %v188 = vshrl.u32 %v187, 7
      %v189 = vadd.s32 %v188, 8
      %vm190 = vcmp.eq.s32.totalorder %v188, 0
      %vm191 = vcmp.eq.s32.totalorder %v189, 0
      %v192 = vrot.slane %v185, 7
      %v193 = vrot.slane %v186, 7
      %vm194 = vcmp.lt.s32.totalorder %v188, 1
      %v195 = vsel %vm194, %v192, %v193
      %v196 = vsel %vm194, %v193, %v192
      %v197 = vsel %vm190, 0.0, %v196
      %v198 = vsel %vm191, 0.0, %v195
      %vm199 = vcmp.eq.s32.totalorder %v188, 15
      %vm200 = vcmp.eq.s32.totalorder %v189, 15
      %v201 = vrot.slane %v185, 1
      %v202 = vrot.slane %v186, 1
      %vm203 = vcmp.lt.s32.totalorder %v188, 7
      %v204 = vsel %vm203, %v201, %v202
      %v205 = vsel %vm203, %v202, %v201
      %v206 = vsel %vm199, 0.0, %v204
      %v207 = vsel %vm200, 0.0, %v205
      %v208 = vld [vmem:[%s1] sm:$0xff]
      %v209 = vld [vmem:[%s1 + $0x8] sm:$0xff]
      %v210 = vld [vmem:[%s1 + $0x10] sm:$0xff]
      %v211 = vld [vmem:[%s1 + $0x18] sm:$0xff]
      %v212 = vld [vmem:[%s1 + $0x20] sm:$0xff]
      %v213 = vld [vmem:[%s1 + $0x28] sm:$0xff]
      %v214 = vld [vmem:[%s1 + $0x30] sm:$0xff]
      %v215 = vld [vmem:[%s1 + $0x38] sm:$0xff]
      %v216 = vld [vmem:[%s1 + $0x40] sm:$0xff]
      %v217 = vld [vmem:[%s1 + $0x48] sm:$0xff]
      %v218 = vld [vmem:[%s1 + $0x50] sm:$0xff]
      %v219 = vld [vmem:[%s1 + $0x58] sm:$0xff]
      %v220 = vld [vmem:[%s1 + $0x60] sm:$0xff]
      %v221 = vld [vmem:[%s1 + $0x68] sm:$0xff]
      %v222 = vld [vmem:[%s1 + $0x70] sm:$0xff]
      %v223 = vld [vmem:[%s1 + $0x78] sm:$0xff]
      %v224 = vld [vmem:[%s1 + $0x80] sm:$0xff]
      %v225 = vld [vmem:[%s1 + $0x88] sm:$0xff]
      %v226 = vld [vmem:[%s1 + $0x90] sm:$0xff]
      %v227 = vld [vmem:[%s1 + $0x98] sm:$0xff]
      %v228 = vld [vmem:[%s1 + $0xa0] sm:$0xff]
      %v229 = vld [vmem:[%s1 + $0xa8] sm:$0xff]
      %v230 = vld [vmem:[%s1 + $0xb0] sm:$0xff]
      %v231 = vld [vmem:[%s1 + $0xb8] sm:$0xff]
      %v232 = vld [vmem:[%s1 + $0xc0] sm:$0xff]
      %v233 = vld [vmem:[%s1 + $0xc8] sm:$0xff]
      %v234 = vld [vmem:[%s1 + $0xd0] sm:$0xff]
      %v235 = vld [vmem:[%s1 + $0xd8] sm:$0xff]
      %v236 = vld [vmem:[%s1 + $0xe0] sm:$0xff]
      %v237 = vld [vmem:[%s1 + $0xe8] sm:$0xff]
      %v238 = vld [vmem:[%s1 + $0xf0] sm:$0xff]
      %v239 = vld [vmem:[%s1 + $0xf8] sm:$0xff]
      %v240 = vld [vmem:[%s1 + $0x100] sm:$0xff]
      %v241 = vld [vmem:[%s1 + $0x108] sm:$0xff]
      %v242 = vld [vmem:[%s1 + $0x110] sm:$0xff]
      %v243 = vld [vmem:[%s1 + $0x118] sm:$0xff]
      %v244 = vld [vmem:[%s1 + $0x120] sm:$0xff]
      %v245 = vld [vmem:[%s1 + $0x128] sm:$0xff]
      %v246 = vld [vmem:[%s1 + $0x130] sm:$0xff]
      %v247 = vld [vmem:[%s1 + $0x138] sm:$0xff]
      %v248 = vld [vmem:[%s1 + $0x140] sm:$0xff]
      %v249 = vld [vmem:[%s1 + $0x148] sm:$0xff]
      %v250 = vld [vmem:[%s1 + $0x150] sm:$0xff]
      %v251 = vld [vmem:[%s1 + $0x158] sm:$0xff]
      %v252 = vld [vmem:[%s1 + $0x160] sm:$0xff]
      %v253 = vld [vmem:[%s1 + $0x168] sm:$0xff]
      %v254 = vld [vmem:[%s1 + $0x170] sm:$0xff]
      %v255 = vld [vmem:[%s1 + $0x178] sm:$0xff]
      %256 = vmatpush.msra.mxu0 %v223
      %257 = vmatpush.msra.mxu0 %v222
      %258 = vmatpush.msra.mxu0 %v221
      %259 = vmatpush.msra.mxu0 %v220
      %260 = vmatpush.msra.mxu0 %v219
      %261 = vmatpush.msra.mxu0 %v218
      %262 = vmatpush.msra.mxu0 %v217
      %263 = vmatpush.msra.mxu0 %v216
      %264 = vmatpush.msra.mxu0 %v215
      %265 = vmatpush.msra.mxu0 %v214
      %266 = vmatpush.msra.mxu0 %v213
      %267 = vmatpush.msra.mxu0 %v212
      %268 = vmatpush.msra.mxu0 %v211
      %269 = vmatpush.msra.mxu0 %v210
      %270 = vmatpush.msra.mxu0 %v209
      %271 = vmatpush.msra.mxu0 %v208
      %272 = vmatmul.f32.gmra.mxu0 %v197
      %v273 = vpop.f32.mrf.mxu0
      %v274 = vadd.f32 0.0, %v273
      %275 = vmatmul.f32.gmra.mxu0 %v198
      %v276 = vpop.f32.mrf.mxu0
      %v277 = vadd.f32 0.0, %v276
      %278 = vdwg.mxu0
      %279 = vmatpush.msra.mxu0 %v239
      %280 = vmatpush.msra.mxu0 %v238
      %281 = vmatpush.msra.mxu0 %v237
      %282 = vmatpush.msra.mxu0 %v236
      %283 = vmatpush.msra.mxu0 %v235
      %284 = vmatpush.msra.mxu0 %v234
      %285 = vmatpush.msra.mxu0 %v233
      %286 = vmatpush.msra.mxu0 %v232
      %287 = vmatpush.msra.mxu0 %v231
      %288 = vmatpush.msra.mxu0 %v230
      %289 = vmatpush.msra.mxu0 %v229
      %290 = vmatpush.msra.mxu0 %v228
      %291 = vmatpush.msra.mxu0 %v227
      %292 = vmatpush.msra.mxu0 %v226
      %293 = vmatpush.msra.mxu0 %v225
      %294 = vmatpush.msra.mxu0 %v224
      %295 = vmatmul.f32.gmra.mxu0 %v185
      %v296 = vpop.f32.mrf.mxu0
      %v297 = vadd.f32 %v274, %v296
      %298 = vmatmul.f32.gmra.mxu0 %v186
      %v299 = vpop.f32.mrf.mxu0
      %v300 = vadd.f32 %v277, %v299
      %301 = vdwg.mxu0
      %302 = vmatpush.msra.mxu0 %v255
      %303 = vmatpush.msra.mxu0 %v254
      %304 = vmatpush.msra.mxu0 %v253
      %305 = vmatpush.msra.mxu0 %v252
      %306 = vmatpush.msra.mxu0 %v251
      %307 = vmatpush.msra.mxu0 %v250
      %308 = vmatpush.msra.mxu0 %v249
      %309 = vmatpush.msra.mxu0 %v248
      %310 = vmatpush.msra.mxu0 %v247
      %311 = vmatpush.msra.mxu0 %v246
      %312 = vmatpush.msra.mxu0 %v245
      %313 = vmatpush.msra.mxu0 %v244
      %314 = vmatpush.msra.mxu0 %v243
      %315 = vmatpush.msra.mxu0 %v242
      %316 = vmatpush.msra.mxu0 %v241
      %317 = vmatpush.msra.mxu0 %v240
      %318 = vmatmul.f32.gmra.mxu0 %v206
      %v319 = vpop.f32.mrf.mxu0
      %v320 = vadd.f32 %v297, %v319
      %321 = vmatmul.f32.gmra.mxu0 %v207
      %v322 = vpop.f32.mrf.mxu0
      %v323 = vadd.f32 %v300, %v322
      %324 = vdwg.mxu0
      %325 = vst [vmem:[%s179] sm:$0xff] %v320
      %326 = vst [vmem:[%s179 + $0x8] sm:$0xff] %v323
      %v327 = vadd.f32 %v320, %v323
      %v328 = vrot.slane %v327, 4
      %v329 = vadd.f32 %v327, %v328
      %v330 = vrot.slane %v329, 2
      %v331 = vadd.f32 %v329, %v330
      %v332 = vrot.slane %v331, 1
      %v333 = vadd.f32 %v331, %v332
      %v334 = vmul.f32 %v320, %v320
      %v335 = vmul.f32 %v323, %v323
      %v336 = vadd.f32 %v334, %v335
      %v337 = vrot.slane %v336, 4
      %v338 = vadd.f32 %v336, %v337
      %v339 = vrot.slane %v338, 2
      %v340 = vadd.f32 %v338, %v339
      %v341 = vrot.slane %v340, 1
      %v342 = vadd.f32 %v340, %v341
      %vm343 = vcmask 1040384
      %v344 = vsel %vm343, %v333, %v342
      %345 = vst [vmem:[%s184] sm:$0x3] %v344
      %s346 = smul.u32 2, %s15
      %p347 = scmp.lt.s32.totalorder %s346, 3
      %s348 = scalar_select %p347, %s346, 3
      %s349 = smul.addr %s348, 8
      %s350 = scalar_lea.vmem %s2, %s349
      %p351 = scmp.lt.s32.totalorder %s15, 1
      %s352 = scalar_select %p351, %s15, 1
      %s353 = smul.addr %s352, 2
      %s354 = scalar_lea.vmem %s3, %s353
      // Predicated region
      $region29: #{nested_block_nhwc.3} parent=27 // pred_check
        %p355 = pneg %p80
      $region30: #{nested_block_nhwc.3} parent=27 // pred_check_branch
        %357 = sbr.rel (%p355) target = $region32
      $region31: #{nested_block_nhwc.3} parent=27 // pred_region
        %s358 = smul.u32 2, %s15
      $region32: #{nested_block_nhwc.3} parent=27 // pred_fallthru
        _
      // Predicated region
      $region33: #{nested_block_nhwc.3} parent=27 // pred_check
        %p359 = pneg %p106
      $region34: #{nested_block_nhwc.3} parent=27 // pred_check_branch
        %361 = sbr.rel (%p359) target = $region36
      $region35: #{nested_block_nhwc.3} parent=27 // pred_region
        _
      $region36: #{nested_block_nhwc.3} parent=27 // pred_fallthru
        _
    $region28: #{nested_block_nhwc.3} parent=5 // pred_fallthru
      _
    %p362 = scmp.le.s32.totalorder 2, %s10
    // Predicated region
    $region37: #{nested_block_nhwc.3} parent=5 // pred_check
      %p363 = pneg %p362
    $region38: #{nested_block_nhwc.3} parent=5 // pred_check_branch
      %365 = sbr.rel (%p363) target = $region40
    $region39: #{nested_block_nhwc.3} parent=5 // pred_region
      %s366 = ssub.s32 %s10, 2
      // Predicated region
      $region41: #{nested_block_nhwc.3} parent=39 // pred_check
        %p367 = pneg %p86
      $region42: #{nested_block_nhwc.3} parent=39 // pred_check_branch
        %369 = sbr.rel (%p367) target = $region44
      $region43: #{nested_block_nhwc.3} parent=39 // pred_region
        %s370 = smul.u32 2, %s16
        %p371 = scmp.lt.s32.totalorder %s370, 3
        %s372 = scalar_select %p371, %s370, 3
        %s373 = smul.addr %s372, 8
        %s374 = scalar_lea.vmem %s2, %s373
      $region44: #{nested_block_nhwc.3} parent=39 // pred_fallthru
        _
      // Predicated region
      $region45: #{nested_block_nhwc.3} parent=39 // pred_check
        %p375 = pneg %p112
      $region46: #{nested_block_nhwc.3} parent=39 // pred_check_branch
        %377 = sbr.rel (%p375) target = $region48
      $region47: #{nested_block_nhwc.3} parent=39 // pred_region
        %p378 = scmp.lt.s32.totalorder %s16, 1
        %s379 = scalar_select %p378, %s16, 1
        %s380 = smul.addr %s379, 2
        %s381 = scalar_lea.vmem %s3, %s380
      $region48: #{nested_block_nhwc.3} parent=39 // pred_fallthru
        _
    $region40: #{nested_block_nhwc.3} parent=5 // pred_fallthru
      _
  $region6: #{nested_block_nhwc.3} parent=0 // loop_footer
    %s14 = sadd.s32 1, %s10
  $region7: #{nested_block_nhwc.3} parent=0 // loop_footer_branch
    %9 = sbr.rel target = $region3
  $region8: #{nested_block_nhwc.3} parent=0 // loop_exit
    _

// kernel: tile.23
$region0: #{tile.23}
  #allocation0 [shape = 's32[1]{0}', space=sflag, size = 0x4, scoped, tag = 'scoped memory for tile.23']
  %s0 = inlined_call_operand.vmem [shape: f32[8], index: 0, kind: input, shape index: {}]
  %s1 = inlined_call_operand.vmem [shape: f32[16,8], index: 1, kind: output, shape index: {}]
  // Predicated region
  $region2: #{tile.23} parent=0 // pred_check
    _
  $region3: #{tile.23} parent=0 // pred_check_branch
    %3 = sbr.rel (0) target = $region5
  $region4: #{tile.23} parent=0 // pred_region
    _
  $region5: #{tile.23} parent=0 // pred_fallthru
    _
  %v4 = vld [vmem:[%s0] ss:$0 sm:$0xff]
  %5 = vst [vmem:[%s1] sm:$0xff] %v4
  %s6 = scalar_lea.vmem %s1, 8
  %7 = vst [vmem:[%s6] sm:$0xff] %v4

// kernel: tile.24
$region0: #{tile.24}
  %s0 = inlined_call_operand.vmem [shape: f32[16,8], index: 0, kind: input, shape index: {}]
  %s1 = inlined_call_operand.vmem [shape: f32[1,128], index: 1, kind: output, shape index: {}]
  $region1: #{tile.24} parent=0
    #allocation0 [shape = 'u8[4096]{0}', space=vmem, size = 0x1000, scoped, tag = 'scoped mem for output reshape']
    %v2 = vld [vmem:[%s0] sm:$0x1]
    %vm3 = vcmask 64512
    %4 = vst.msk [vmem:[#allocation0] sm:$0x1] %vm3, %v2
    %s5 = scalar_lea.vmem %s0, 15
    %v6 = vld [vmem:[%s5] sm:$0x1]
    %7 = vrot.lane.b32.xlu0 %v6, 120
    %v8 = vpop.permute.xlu0 %7
    %vm9 = vcmask 1048512
    %10 = vst.msk [vmem:[#allocation0] sm:$0x1] %vm9, %v8
    %s11 = scalar_lea.vmem %s0, 14
    %v12 = vld [vmem:[%s11] sm:$0x1]
    %13 = vrot.lane.b32.xlu0 %v12, 112
    %v14 = vpop.permute.xlu0 %13
    %vm15 = vcmask 982912
    %16 = vst.msk [vmem:[#allocation0] sm:$0x1] %vm15, %v14
    %s17 = scalar_lea.vmem %s0, 13
    %v18 = vld [vmem:[%s17] sm:$0x1]
    %19 = vrot.lane.b32.xlu0 %v18, 104
    %v20 = vpop.permute.xlu0 %19
    %vm21 = vcmask 917312
    %22 = vst.msk [vmem:[#allocation0] sm:$0x1] %vm21, %v20
    %s23 = scalar_lea.vmem %s0, 12
    %v24 = vld [vmem:[%s23] sm:$0x1]
    %25 = vrot.lane.b32.xlu0 %v24, 96
    %v26 = vpop.permute.xlu0 %25
    %vm27 = vcmask 851712
    %28 = vst.msk [vmem:[#allocation0] sm:$0x1] %vm27, %v26
    %s29 = scalar_lea.vmem %s0, 11
    %v30 = vld [vmem:[%s29] sm:$0x1]
    %31 = vrot.lane.b32.xlu0 %v30, 88
    %v32 = vpop.permute.xlu0 %31
    %vm33 = vcmask 786112
    %34 = vst.msk [vmem:[#allocation0] sm:$0x1] %vm33, %v32
    %s35 = scalar_lea.vmem %s0, 10
    %v36 = vld [vmem:[%s35] sm:$0x1]
    %37 = vrot.lane.b32.xlu0 %v36, 80
    %v38 = vpop.permute.xlu0 %37
    %vm39 = vcmask 720512
    %40 = vst.msk [vmem:[#allocation0] sm:$0x1] %vm39, %v38
    %s41 = scalar_lea.vmem %s0, 9
    %v42 = vld [vmem:[%s41] sm:$0x1]
    %43 = vrot.lane.b32.xlu0 %v42, 72
    %v44 = vpop.permute.xlu0 %43
    %vm45 = vcmask 654912
    %46 = vst.msk [vmem:[#allocation0] sm:$0x1] %vm45, %v44
    %s47 = scalar_lea.vmem %s0, 8
    %v48 = vld [vmem:[%s47] sm:$0x1]
    %49 = vrot.lane.b32.xlu0 %v48, 64
    %v50 = vpop.permute.xlu0 %49
    %vm51 = vcmask 589312
    %52 = vst.msk [vmem:[#allocation0] sm:$0x1] %vm51, %v50
    %s53 = scalar_lea.vmem %s0, 7
    %v54 = vld [vmem:[%s53] sm:$0x1]
    %55 = vrot.lane.b32.xlu0 %v54, 56
    %v56 = vpop.permute.xlu0 %55
    %vm57 = vcmask 523712
    %58 = vst.msk [vmem:[#allocation0] sm:$0x1] %vm57, %v56
    %s59 = scalar_lea.vmem %s0, 6
    %v60 = vld [vmem:[%s59] sm:$0x1]
    %61 = vrot.lane.b32.xlu0 %v60, 48
    %v62 = vpop.permute.xlu0 %61
    %vm63 = vcmask 458112
    %64 = vst.msk [vmem:[#allocation0] sm:$0x1] %vm63, %v62
    %s65 = scalar_lea.vmem %s0, 5
    %v66 = vld [vmem:[%s65] sm:$0x1]
    %67 = vrot.lane.b32.xlu0 %v66, 40
    %v68 = vpop.permute.xlu0 %67
    %vm69 = vcmask 392512
    %70 = vst.msk [vmem:[#allocation0] sm:$0x1] %vm69, %v68
    %s71 = scalar_lea.vmem %s0, 4
    %v72 = vld [vmem:[%s71] sm:$0x1]
    %73 = vrot.lane.b32.xlu0 %v72, 32
    %v74 = vpop.permute.xlu0 %73
    %vm75 = vcmask 326912
    %76 = vst.msk [vmem:[#allocation0] sm:$0x1] %vm75, %v74
    %s77 = scalar_lea.vmem %s0, 3
    %v78 = vld [vmem:[%s77] sm:$0x1]
    %79 = vrot.lane.b32.xlu0 %v78, 24
    %v80 = vpop.permute.xlu0 %79
    %vm81 = vcmask 261312
    %82 = vst.msk [vmem:[#allocation0] sm:$0x1] %vm81, %v80
    %s83 = scalar_lea.vmem %s0, 2
    %v84 = vld [vmem:[%s83] sm:$0x1]
    %85 = vrot.lane.b32.xlu0 %v84, 16
    %v86 = vpop.permute.xlu0 %85
    %vm87 = vcmask 195712
    %88 = vst.msk [vmem:[#allocation0] sm:$0x1] %vm87, %v86
    %s89 = scalar_lea.vmem %s0, 1
    %v90 = vld [vmem:[%s89] sm:$0x1]
    %91 = vrot.lane.b32.xlu0 %v90, 8
    %v92 = vpop.permute.xlu0 %91
    %vm93 = vcmask 130112
    %94 = vst.msk [vmem:[#allocation0] sm:$0x1] %vm93, %v92
    %s96 = ssub.s32 2, 1
    %v97 = vld [vmem:[#allocation0] sm:%s96]
    %s99 = ssub.s32 2, 1
    %100 = vst [vmem:[%s1] sm:%s99] %v97

// kernel: nested_block_nhwc.5
$region0: #{nested_block_nhwc.5}
  #allocation0 [shape = 'u32[]', space=smem, size = 0x4, offset = 0x4, fixed_abs, tag = 'smem constant byte address 0x4 - core index']
  #allocation1 [shape = 'u32[72,128]{1,0:T(1,128)}', space=vmem, size = 0x9000, scoped, tag = 'internal scratch']
  %s0 = inlined_call_operand.vmem [shape: f32[32,128], index: 0, kind: input, shape index: {}]
  %s1 = inlined_call_operand.vmem [shape: f32[1,128], index: 1, kind: input, shape index: {}]
  %s2 = inlined_call_operand.vmem [shape: f32[1,128], index: 2, kind: input, shape index: {}]
  %s3 = inlined_call_operand.vmem [shape: f32[32,128], index: 3, kind: output, shape index: {}]
  %s4 = sld [smem:[#allocation0]]
  $region45: #{nested_block_nhwc.5} parent=0
    _
  %s6 = ssub.s32 1, %s4
  %s7 = scalar_select 0, %s6, %s4
  loop: start=0, step=1, limit=4
  $region2: #{nested_block_nhwc.5} parent=0 // loop_pre_header
    _
  $region3: #{nested_block_nhwc.5} parent=0 // loop_header
    %s9 = sphi 0, %s13
    %p10 = scmp.ge.s32.totalorder %s9, 4
    %s19 = sphi 0, %s21
    %s22 = sphi 0, %s19
    %s23 = sphi 0, %s22
    %s39 = sphi 0, %s23
    %s43 = sphi 0, %s43
    %s45 = sphi 0, %s43
    %s46 = sphi 0, %s45
    %s60 = sphi 0, %s46
    %s64 = sphi 0, %s64
    %s66 = sphi 0, %s64
    %s67 = sphi 0, %s66
    %s81 = sphi 0, %s67
    %s87 = sphi 0, %s89
    %s90 = sphi 0, %s87
    %s91 = sphi 0, %s90
    %s107 = sphi 0, %s91
  $region4: #{nested_block_nhwc.5} parent=0 // loop_header_branch
    %12 = sbr.rel (%p10) target = $region8
  $region5: #{nested_block_nhwc.5} parent=0 // loop_body
    %s14 = ssub.s32 %s9, 1
    %s15 = ssub.s32 %s9, 2
    %s16 = sadd.s32 %s9, 1
    %s17 = ssub.s32 %s9, %s16
    %p18 = scmp.eq.s32.totalorder %s17, 0
    %s20 = sadd.s32 %s19, 1
    %s21 = scalar_select %p18, %s19, %s20
    %p24 = pneg %p18
    %p25 = scmp.eq.s32.totalorder %s9, 1
    %p26 = por %p24, %p25
    %p27 = scmp.ne.s32.totalorder %s19, %s22
    %p28 = scmp.eq.s32.totalorder %s9, 0
    %p29 = por %p27, %p28
    %p30 = scmp.ne.s32.totalorder %s19, %s22
    %p31 = scmp.eq.s32.totalorder %s14, 1
    %p32 = por %p30, %p31
    %p33 = scmp.ne.s32.totalorder %s22, %s23
    %p34 = scmp.eq.s32.totalorder %s14, 0
    %p35 = por %p33, %p34
    %p36 = scmp.ne.s32.totalorder %s22, %s23
    %p37 = scmp.eq.s32.totalorder %s15, 1
    %p38 = por %p36, %p37
    %p40 = scmp.ne.s32.totalorder %s23, %s39
    %p41 = scmp.eq.s32.totalorder %s15, 0
    %p42 = por %p40, %p41
    %s44 = sadd.s32 %s43, 1
    %p47 = scmp.eq.s32.totalorder %s9, 1
    %p48 = scmp.ne.s32.totalorder %s43, %s45
    %p49 = scmp.eq.s32.totalorder %s9, 0
    %p50 = por %p48, %p49
    %p51 = scmp.ne.s32.totalorder %s43, %s45
    %p52 = scmp.eq.s32.totalorder %s14, 1
    %p53 = por %p51, %p52
    %p54 = scmp.ne.s32.totalorder %s45, %s46
    %p55 = scmp.eq.s32.totalorder %s14, 0
    %p56 = por %p54, %p55
    %p57 = scmp.ne.s32.totalorder %s45, %s46
    %p58 = scmp.eq.s32.totalorder %s15, 1
    %p59 = por %p57, %p58
    %p61 = scmp.ne.s32.totalorder %s46, %s60
    %p62 = scmp.eq.s32.totalorder %s15, 0
    %p63 = por %p61, %p62
    %s65 = sadd.s32 %s64, 1
    %p68 = scmp.eq.s32.totalorder %s9, 1
    %p69 = scmp.ne.s32.totalorder %s64, %s66
    %p70 = scmp.eq.s32.totalorder %s9, 0
    %p71 = por %p69, %p70
    %p72 = scmp.ne.s32.totalorder %s64, %s66
    %p73 = scmp.eq.s32.totalorder %s14, 1
    %p74 = por %p72, %p73
    %p75 = scmp.ne.s32.totalorder %s66, %s67
    %p76 = scmp.eq.s32.totalorder %s14, 0
    %p77 = por %p75, %p76
    %p78 = scmp.ne.s32.totalorder %s66, %s67
    %p79 = scmp.eq.s32.totalorder %s15, 1
    %p80 = por %p78, %p79
    %p82 = scmp.ne.s32.totalorder %s67, %s81
    %p83 = scmp.eq.s32.totalorder %s15, 0
    %p84 = por %p82, %p83
    %s85 = ssub.s32 %s9, %s16
    %p86 = scmp.eq.s32.totalorder %s85, 0
    %s88 = sadd.s32 %s87, 1
    %s89 = scalar_select %p86, %s87, %s88
    %p92 = pneg %p86
    %p93 = scmp.eq.s32.totalorder %s9, 1
    %p94 = por %p92, %p93
    %p95 = scmp.ne.s32.totalorder %s87, %s90
    %p96 = scmp.eq.s32.totalorder %s9, 0
    %p97 = por %p95, %p96
    %p98 = scmp.ne.s32.totalorder %s87, %s90
    %p99 = scmp.eq.s32.totalorder %s14, 1
    %p100 = por %p98, %p99
    %p101 = scmp.ne.s32.totalorder %s90, %s91
    %p102 = scmp.eq.s32.totalorder %s14, 0
    %p103 = por %p101, %p102
    %p104 = scmp.ne.s32.totalorder %s90, %s91
    %p105 = scmp.eq.s32.totalorder %s15, 1
    %p106 = por %p104, %p105
    %p108 = scmp.ne.s32.totalorder %s91, %s107
    %p109 = scmp.eq.s32.totalorder %s15, 0
    %p110 = por %p108, %p109
    %p111 = scmp.le.s32.totalorder 1, %s9
    %p112 = scmp.lt.s32.totalorder %s9, 3
    %p113 = pnand %p111, %p112
    %p114 = pneg %p113
    // Predicated region
    $region9: #{nested_block_nhwc.5} parent=5 // pred_check
      _
    $region10: #{nested_block_nhwc.5} parent=5 // pred_check_branch
      %116 = sbr.rel (%p113) target = $region12
    $region11: #{nested_block_nhwc.5} parent=5 // pred_region
      %s117 = ssub.s32 %s9, 1
      // Predicated region
      $region13: #{nested_block_nhwc.5} parent=11 // pred_check
        %p118 = pneg %p56
      $region14: #{nested_block_nhwc.5} parent=11 // pred_check_branch
        %120 = sbr.rel (%p118) target = $region16
      $region15: #{nested_block_nhwc.5} parent=11 // pred_region
        _
      $region16: #{nested_block_nhwc.5} parent=11 // pred_fallthru
        _
      // Predicated region
      $region17: #{nested_block_nhwc.5} parent=11 // pred_check
        %p121 = pneg %p77
      $region18: #{nested_block_nhwc.5} parent=11 // pred_check_branch
        %123 = sbr.rel (%p121) target = $region20
      $region19: #{nested_block_nhwc.5} parent=11 // pred_region
        _
      $region20: #{nested_block_nhwc.5} parent=11 // pred_fallthru
        _
    $region12: #{nested_block_nhwc.5} parent=5 // pred_fallthru
      _
    %p124 = scmp.lt.s32.totalorder %s9, 2
    // Predicated region
    $region21: #{nested_block_nhwc.5} parent=5 // pred_check
      %p125 = pneg %p124
    $region22: #{nested_block_nhwc.5} parent=5 // pred_check_branch
      %127 = sbr.rel (%p125) target = $region24
    $region23: #{nested_block_nhwc.5} parent=5 // pred_region
      // Predicated region
      $region25: #{nested_block_nhwc.5} parent=23 // pred_check
        %p128 = pneg %p29
      $region26: #{nested_block_nhwc.5} parent=23 // pred_check_branch
        %130 = sbr.rel (%p128) target = $region28
      $region27: #{nested_block_nhwc.5} parent=23 // pred_region
        %s131 = smul.u32 2, %s9
        %p132 = scmp.lt.s32.totalorder %s131, 3
        %s133 = scalar_select %p132, %s131, 3
        %s134 = smul.addr %s133, 8
        %s135 = scalar_lea.vmem %s0, %s134
        %s136 = smul.u32 2, %s9
      $region28: #{nested_block_nhwc.5} parent=23 // pred_fallthru
        _
    $region24: #{nested_block_nhwc.5} parent=5 // pred_fallthru
      _
    %p137 = scmp.le.s32.totalorder 1, %s9
    %p138 = scmp.lt.s32.totalorder %s9, 3
    %p139 = pnand %p137, %p138
    %p140 = pneg %p139
    // Predicated region
    $region29: #{nested_block_nhwc.5} parent=5 // pred_check
      _
    $region30: #{nested_block_nhwc.5} parent=5 // pred_check_branch
      %142 = sbr.rel (%p139) target = $region32
    $region31: #{nested_block_nhwc.5} parent=5 // pred_region
      %s143 = ssub.s32 %s9, 1
      %s144 = smul.u32 2, %s14
      %p145 = scmp.lt.s32.totalorder %s144, 3
      %s146 = scalar_select %p145, %s144, 3
      %s147 = smul.addr %s146, 8
      %s148 = scalar_lea.vmem %s0, %s147
      %p149 = pneg %p35
      %p150 = pneg %p32
      %p151 = pneg %p56
      %p152 = pneg %p53
      %p153 = pneg %p77
      %p154 = pneg %p74
      %p155 = pneg %p103
      %p156 = pneg %p100
      %s157 = smul.u32 2, %s14
      %p158 = scmp.lt.s32.totalorder %s157, 3
      %s159 = scalar_select %p158, %s157, 3
      %s160 = smul.addr %s159, 8
      %s161 = scalar_lea.vmem %s3, %s160
      %s162 = smul.u32 2, %s14
      %p163 = scmp.lt.s32.totalorder %s162, 3
      %s164 = scalar_select %p163, %s162, 3
      %s165 = smul.addr %s164, 8
      %s166 = scalar_lea.vmem %s0, %s165
      %s167 = smul.u32 2, %s14
      %s168 = smul.u32 2, %s14
      %p169 = scmp.lt.s32.totalorder %s168, 3
      %s170 = scalar_select %p169, %s168, 3
      %s171 = smul.addr %s170, 8
      %s172 = scalar_lea.vmem %s3, %s171
      %s173 = smul.u32 2, %s14
      %v174 = vld [vmem:[%s166] sm:$0xff]
      %v175 = vld [vmem:[%s166 + $0x8] sm:$0xff]
      %v176 = vld [vmem:[%s1] sm:$0x1]
      %v178 = vperm.slane %v176, 0
      %v180 = vmul.f32 %v174, %v178
      %v181 = vmul.f32 %v175, %v178
      %v182 = vld [vmem:[%s2] sm:$0x1]
      %v184 = vperm.slane %v182, 0
      %v186 = vadd.f32 %v180, %v184
      %v187 = vadd.f32 %v181, %v184
      %v188 = vmax.f32 %v186, 0.0
      %v189 = vmax.f32 %v187, 0.0
      %190 = vst [vmem:[%s172] sm:$0xff] %v188
      %191 = vst [vmem:[%s172 + $0x8] sm:$0xff] %v189
      %s192 = smul.u32 2, %s14
      %p193 = scmp.lt.s32.totalorder %s192, 3
      %s194 = scalar_select %p193, %s192, 3
      %s195 = smul.addr %s194, 8
      %s196 = scalar_lea.vmem %s3, %s195
      // Predicated region
      $region33: #{nested_block_nhwc.5} parent=31 // pred_check
        %p197 = pneg %p100
      $region34: #{nested_block_nhwc.5} parent=31 // pred_check_branch
        %199 = sbr.rel (%p197) target = $region36
      $region35: #{nested_block_nhwc.5} parent=31 // pred_region
        %s200 = smul.u32 2, %s14
      $region36: #{nested_block_nhwc.5} parent=31 // pred_fallthru
        _
    $region32: #{nested_block_nhwc.5} parent=5 // pred_fallthru
      _
    %p201 = scmp.le.s32.totalorder 2, %s9
    // Predicated region
    $region37: #{nested_block_nhwc.5} parent=5 // pred_check
      %p202 = pneg %p201
    $region38: #{nested_block_nhwc.5} parent=5 // pred_check_branch
      %204 = sbr.rel (%p202) target = $region40
    $region39: #{nested_block_nhwc.5} parent=5 // pred_region
      %s205 = ssub.s32 %s9, 2
      // Predicated region
      $region41: #{nested_block_nhwc.5} parent=39 // pred_check
        %p206 = pneg %p106
      $region42: #{nested_block_nhwc.5} parent=39 // pred_check_branch
        %208 = sbr.rel (%p206) target = $region44
      $region43: #{nested_block_nhwc.5} parent=39 // pred_region
        %s209 = smul.u32 2, %s15
        %p210 = scmp.lt.s32.totalorder %s209, 3
        %s211 = scalar_select %p210, %s209, 3
        %s212 = smul.addr %s211, 8
        %s213 = scalar_lea.vmem %s3, %s212
      $region44: #{nested_block_nhwc.5} parent=39 // pred_fallthru
        _
    $region40: #{nested_block_nhwc.5} parent=5 // pred_fallthru
      _
  $region6: #{nested_block_nhwc.5} parent=0 // loop_footer
    %s13 = sadd.s32 1, %s9
  $region7: #{nested_block_nhwc.5} parent=0 // loop_footer_branch
    %8 = sbr.rel target = $region3
  $region8: #{nested_block_nhwc.5} parent=0 // loop_exit
    _

// kernel: nested_block_nhwc.4
$region0: #{nested_block_nhwc.4}
  #allocation0 [shape = 'u32[]', space=smem, size = 0x4, offset = 0x4, fixed_abs, tag = 'smem constant byte address 0x4 - core index']
  #allocation1 [shape = 'u32[72,128]{1,0:T(1,128)}', space=vmem, size = 0x9000, scoped, tag = 'internal scratch']
  %s0 = inlined_call_operand.vmem [shape: f32[32,128], index: 0, kind: input, shape index: {}]
  %s1 = inlined_call_operand.vmem [shape: f32[1,128], index: 1, kind: input, shape index: {}]
  %s2 = inlined_call_operand.vmem [shape: f32[1,128], index: 2, kind: input, shape index: {}]
  %s3 = inlined_call_operand.vmem [shape: f32[384,128], index: 3, kind: input, shape index: {}]
  %s4 = inlined_call_operand.vmem [shape: f32[32,128], index: 4, kind: output, shape index: {0}]
  %s5 = inlined_call_operand.vmem [shape: f32[2,2,128], index: 5, kind: output, shape index: {1}]
  %6 = xla_tuple %s4, %s5
  %s7 = sld [smem:[#allocation0]]
  $region57: #{nested_block_nhwc.4} parent=0
    _
  %s9 = ssub.s32 1, %s7
  %s10 = scalar_select 0, %s9, %s7
  loop: start=0, step=1, limit=4
  $region2: #{nested_block_nhwc.4} parent=0 // loop_pre_header
    _
  $region3: #{nested_block_nhwc.4} parent=0 // loop_header
    %s12 = sphi 0, %s16
    %p13 = scmp.ge.s32.totalorder %s12, 4
    %s22 = sphi 0, %s24
    %s25 = sphi 0, %s22
    %s26 = sphi 0, %s25
    %s42 = sphi 0, %s26
    %s46 = sphi 0, %s46
    %s48 = sphi 0, %s46
    %s49 = sphi 0, %s48
    %s63 = sphi 0, %s49
    %s67 = sphi 0, %s67
    %s69 = sphi 0, %s67
    %s70 = sphi 0, %s69
    %s84 = sphi 0, %s70
    %s88 = sphi 0, %s88
    %s90 = sphi 0, %s88
    %s91 = sphi 0, %s90
    %s105 = sphi 0, %s91
    %s111 = sphi 0, %s113
    %s114 = sphi 0, %s111
    %s115 = sphi 0, %s114
    %s131 = sphi 0, %s115
    %s137 = sphi 0, %s139
    %s140 = sphi 0, %s137
    %s141 = sphi 0, %s140
    %s157 = sphi 0, %s141
  $region4: #{nested_block_nhwc.4} parent=0 // loop_header_branch
    %15 = sbr.rel (%p13) target = $region8
  $region5: #{nested_block_nhwc.4} parent=0 // loop_body
    %s17 = ssub.s32 %s12, 1
    %s18 = ssub.s32 %s12, 2
    %s19 = sadd.s32 %s12, 1
    %s20 = ssub.s32 %s12, %s19
    %p21 = scmp.eq.s32.totalorder %s20, 0
    %s23 = sadd.s32 %s22, 1
    %s24 = scalar_select %p21, %s22, %s23
    %p27 = pneg %p21
    %p28 = scmp.eq.s32.totalorder %s12, 1
    %p29 = por %p27, %p28
    %p30 = scmp.ne.s32.totalorder %s22, %s25
    %p31 = scmp.eq.s32.totalorder %s12, 0
    %p32 = por %p30, %p31
    %p33 = scmp.ne.s32.totalorder %s22, %s25
    %p34 = scmp.eq.s32.totalorder %s17, 1
    %p35 = por %p33, %p34
    %p36 = scmp.ne.s32.totalorder %s25, %s26
    %p37 = scmp.eq.s32.totalorder %s17, 0
    %p38 = por %p36, %p37
    %p39 = scmp.ne.s32.totalorder %s25, %s26
    %p40 = scmp.eq.s32.totalorder %s18, 1
    %p41 = por %p39, %p40
    %p43 = scmp.ne.s32.totalorder %s26, %s42
    %p44 = scmp.eq.s32.totalorder %s18, 0
    %p45 = por %p43, %p44
    %s47 = sadd.s32 %s46, 1
    %p50 = scmp.eq.s32.totalorder %s12, 1
    %p51 = scmp.ne.s32.totalorder %s46, %s48
    %p52 = scmp.eq.s32.totalorder %s12, 0
    %p53 = por %p51, %p52
    %p54 = scmp.ne.s32.totalorder %s46, %s48
    %p55 = scmp.eq.s32.totalorder %s17, 1
    %p56 = por %p54, %p55
    %p57 = scmp.ne.s32.totalorder %s48, %s49
    %p58 = scmp.eq.s32.totalorder %s17, 0
    %p59 = por %p57, %p58
    %p60 = scmp.ne.s32.totalorder %s48, %s49
    %p61 = scmp.eq.s32.totalorder %s18, 1
    %p62 = por %p60, %p61
    %p64 = scmp.ne.s32.totalorder %s49, %s63
    %p65 = scmp.eq.s32.totalorder %s18, 0
    %p66 = por %p64, %p65
    %s68 = sadd.s32 %s67, 1
    %p71 = scmp.eq.s32.totalorder %s12, 1
    %p72 = scmp.ne.s32.totalorder %s67, %s69
    %p73 = scmp.eq.s32.totalorder %s12, 0
    %p74 = por %p72, %p73
    %p75 = scmp.ne.s32.totalorder %s67, %s69
    %p76 = scmp.eq.s32.totalorder %s17, 1
    %p77 = por %p75, %p76
    %p78 = scmp.ne.s32.totalorder %s69, %s70
    %p79 = scmp.eq.s32.totalorder %s17, 0
    %p80 = por %p78, %p79
    %p81 = scmp.ne.s32.totalorder %s69, %s70
    %p82 = scmp.eq.s32.totalorder %s18, 1
    %p83 = por %p81, %p82
    %p85 = scmp.ne.s32.totalorder %s70, %s84
    %p86 = scmp.eq.s32.totalorder %s18, 0
    %p87 = por %p85, %p86
    %s89 = sadd.s32 %s88, 1
    %p92 = scmp.eq.s32.totalorder %s12, 1
    %p93 = scmp.ne.s32.totalorder %s88, %s90
    %p94 = scmp.eq.s32.totalorder %s12, 0
    %p95 = por %p93, %p94
    %p96 = scmp.ne.s32.totalorder %s88, %s90
    %p97 = scmp.eq.s32.totalorder %s17, 1
    %p98 = por %p96, %p97
    %p99 = scmp.ne.s32.totalorder %s90, %s91
    %p100 = scmp.eq.s32.totalorder %s17, 0
    %p101 = por %p99, %p100
    %p102 = scmp.ne.s32.totalorder %s90, %s91
    %p103 = scmp.eq.s32.totalorder %s18, 1
    %p104 = por %p102, %p103
    %p106 = scmp.ne.s32.totalorder %s91, %s105
    %p107 = scmp.eq.s32.totalorder %s18, 0
    %p108 = por %p106, %p107
    %s109 = ssub.s32 %s12, %s19
    %p110 = scmp.eq.s32.totalorder %s109, 0
    %s112 = sadd.s32 %s111, 1
    %s113 = scalar_select %p110, %s111, %s112
    %p116 = pneg %p110
    %p117 = scmp.eq.s32.totalorder %s12, 1
    %p118 = por %p116, %p117
    %p119 = scmp.ne.s32.totalorder %s111, %s114
    %p120 = scmp.eq.s32.totalorder %s12, 0
    %p121 = por %p119, %p120
    %p122 = scmp.ne.s32.totalorder %s111, %s114
    %p123 = scmp.eq.s32.totalorder %s17, 1
    %p124 = por %p122, %p123
    %p125 = scmp.ne.s32.totalorder %s114, %s115
    %p126 = scmp.eq.s32.totalorder %s17, 0
    %p127 = por %p125, %p126
    %p128 = scmp.ne.s32.totalorder %s114, %s115
    %p129 = scmp.eq.s32.totalorder %s18, 1
    %p130 = por %p128, %p129
    %p132 = scmp.ne.s32.totalorder %s115, %s131
    %p133 = scmp.eq.s32.totalorder %s18, 0
    %p134 = por %p132, %p133
    %s135 = ssub.s32 %s12, %s19
    %p136 = scmp.eq.s32.totalorder %s135, 0
    %s138 = sadd.s32 %s137, 1
    %s139 = scalar_select %p136, %s137, %s138
    %p142 = pneg %p136
    %p143 = scmp.eq.s32.totalorder %s12, 1
    %p144 = por %p142, %p143
    %p145 = scmp.ne.s32.totalorder %s137, %s140
    %p146 = scmp.eq.s32.totalorder %s12, 0
    %p147 = por %p145, %p146
    %p148 = scmp.ne.s32.totalorder %s137, %s140
    %p149 = scmp.eq.s32.totalorder %s17, 1
    %p150 = por %p148, %p149
    %p151 = scmp.ne.s32.totalorder %s140, %s141
    %p152 = scmp.eq.s32.totalorder %s17, 0
    %p153 = por %p151, %p152
    %p154 = scmp.ne.s32.totalorder %s140, %s141
    %p155 = scmp.eq.s32.totalorder %s18, 1
    %p156 = por %p154, %p155
    %p158 = scmp.ne.s32.totalorder %s141, %s157
    %p159 = scmp.eq.s32.totalorder %s18, 0
    %p160 = por %p158, %p159
    %p161 = scmp.le.s32.totalorder 1, %s12
    %p162 = scmp.lt.s32.totalorder %s12, 3
    %p163 = pnand %p161, %p162
    %p164 = pneg %p163
    // Predicated region
    $region9: #{nested_block_nhwc.4} parent=5 // pred_check
      _
    $region10: #{nested_block_nhwc.4} parent=5 // pred_check_branch
      %166 = sbr.rel (%p163) target = $region12
    $region11: #{nested_block_nhwc.4} parent=5 // pred_region
      %s167 = ssub.s32 %s12, 1
      // Predicated region
      $region13: #{nested_block_nhwc.4} parent=11 // pred_check
        %p168 = pneg %p59
      $region14: #{nested_block_nhwc.4} parent=11 // pred_check_branch
        %170 = sbr.rel (%p168) target = $region16
      $region15: #{nested_block_nhwc.4} parent=11 // pred_region
        _
      $region16: #{nested_block_nhwc.4} parent=11 // pred_fallthru
        _
      // Predicated region
      $region17: #{nested_block_nhwc.4} parent=11 // pred_check
        %p171 = pneg %p80
      $region18: #{nested_block_nhwc.4} parent=11 // pred_check_branch
        %173 = sbr.rel (%p171) target = $region20
      $region19: #{nested_block_nhwc.4} parent=11 // pred_region
        _
      $region20: #{nested_block_nhwc.4} parent=11 // pred_fallthru
        _
      // Predicated region
      $region21: #{nested_block_nhwc.4} parent=11 // pred_check
        %p174 = pneg %p101
      $region22: #{nested_block_nhwc.4} parent=11 // pred_check_branch
        %176 = sbr.rel (%p174) target = $region24
      $region23: #{nested_block_nhwc.4} parent=11 // pred_region
        _
      $region24: #{nested_block_nhwc.4} parent=11 // pred_fallthru
        _
    $region12: #{nested_block_nhwc.4} parent=5 // pred_fallthru
      _
    %p177 = scmp.lt.s32.totalorder %s12, 2
    // Predicated region
    $region25: #{nested_block_nhwc.4} parent=5 // pred_check
      %p178 = pneg %p177
    $region26: #{nested_block_nhwc.4} parent=5 // pred_check_branch
      %180 = sbr.rel (%p178) target = $region28
    $region27: #{nested_block_nhwc.4} parent=5 // pred_region
      // Predicated region
      $region29: #{nested_block_nhwc.4} parent=27 // pred_check
        %p181 = pneg %p32
      $region30: #{nested_block_nhwc.4} parent=27 // pred_check_branch
        %183 = sbr.rel (%p181) target = $region32
      $region31: #{nested_block_nhwc.4} parent=27 // pred_region
        %s184 = smul.u32 2, %s12
        %p185 = scmp.lt.s32.totalorder %s184, 3
        %s186 = scalar_select %p185, %s184, 3
        %s187 = smul.addr %s186, 8
        %s188 = scalar_lea.vmem %s0, %s187
        %s189 = smul.u32 2, %s12
      $region32: #{nested_block_nhwc.4} parent=27 // pred_fallthru
        _
    $region28: #{nested_block_nhwc.4} parent=5 // pred_fallthru
      _
    %p190 = scmp.le.s32.totalorder 1, %s12
    %p191 = scmp.lt.s32.totalorder %s12, 3
    %p192 = pnand %p190, %p191
    %p193 = pneg %p192
    // Predicated region
    $region33: #{nested_block_nhwc.4} parent=5 // pred_check
      _
    $region34: #{nested_block_nhwc.4} parent=5 // pred_check_branch
      %195 = sbr.rel (%p192) target = $region36
    $region35: #{nested_block_nhwc.4} parent=5 // pred_region
      %s196 = ssub.s32 %s12, 1
      %s197 = smul.u32 2, %s17
      %p198 = scmp.lt.s32.totalorder %s197, 3
      %s199 = scalar_select %p198, %s197, 3
      %s200 = smul.addr %s199, 8
      %s201 = scalar_lea.vmem %s0, %s200
      %p202 = pneg %p38
      %p203 = pneg %p35
      %p204 = pneg %p59
      %p205 = pneg %p56
      %p206 = pneg %p80
      %p207 = pneg %p77
      %p208 = pneg %p101
      %p209 = pneg %p98
      %p210 = pneg %p127
      %p211 = pneg %p124
      %s212 = smul.u32 2, %s17
      %p213 = scmp.lt.s32.totalorder %s212, 3
      %s214 = scalar_select %p213, %s212, 3
      %s215 = smul.addr %s214, 8
      %s216 = scalar_lea.vmem %s4, %s215
      %p217 = pneg %p153
      %p218 = pneg %p150
      %p219 = scmp.lt.s32.totalorder %s17, 1
      %s220 = scalar_select %p219, %s17, 1
      %s221 = smul.addr %s220, 2
      %s222 = scalar_lea.vmem %s5, %s221
      %s223 = smul.u32 2, %s17
      %p224 = scmp.lt.s32.totalorder %s223, 3
      %s225 = scalar_select %p224, %s223, 3
      %s226 = smul.addr %s225, 8
      %s227 = scalar_lea.vmem %s0, %s226
      %s228 = smul.u32 2, %s17
      %s229 = smul.u32 2, %s17
      %p230 = scmp.lt.s32.totalorder %s229, 3
      %s231 = scalar_select %p230, %s229, 3
      %s232 = smul.addr %s231, 8
      %s233 = scalar_lea.vmem %s4, %s232
      %s234 = smul.u32 2, %s17
      %p235 = scmp.lt.s32.totalorder %s17, 1
      %s236 = scalar_select %p235, %s17, 1
      %s237 = smul.addr %s236, 2
      %s238 = scalar_lea.vmem %s5, %s237
      %v239 = vld [vmem:[%s227] sm:$0xff]
      %v240 = vld [vmem:[%s227 + $0x8] sm:$0xff]
      %v241 = vld [vmem:[%s1] sm:$0x1]
      %v243 = vperm.slane %v241, 0
      %v245 = vmul.f32 %v239, %v243
      %v246 = vmul.f32 %v240, %v243
      %v247 = vld [vmem:[%s2] sm:$0x1]
      %v249 = vperm.slane %v247, 0
      %v251 = vadd.f32 %v245, %v249
      %v252 = vadd.f32 %v246, %v249
      %v253 = vmax.f32 %v251, 0.0
      %v254 = vmax.f32 %v252, 0.0
      %v255 = vlaneseq
      %v256 = vshrl.u32 %v255, 7
      %v257 = vadd.s32 %v256, 8
      %vm258 = vcmp.eq.s32.totalorder %v256, 0
      %vm259 = vcmp.eq.s32.totalorder %v257, 0
      %v260 = vrot.slane %v253, 7
      %v261 = vrot.slane %v254, 7
      %vm262 = vcmp.lt.s32.totalorder %v256, 1
      %v263 = vsel %vm262, %v260, %v261
      %v264 = vsel %vm262, %v261, %v260
      %v265 = vsel %vm258, 0.0, %v264
      %v266 = vsel %vm259, 0.0, %v263
      %vm267 = vcmp.eq.s32.totalorder %v256, 15
      %vm268 = vcmp.eq.s32.totalorder %v257, 15
      %v269 = vrot.slane %v253, 1
      %v270 = vrot.slane %v254, 1
      %vm271 = vcmp.lt.s32.totalorder %v256, 7
      %v272 = vsel %vm271, %v269, %v270
      %v273 = vsel %vm271, %v270, %v269
      %v274 = vsel %vm267, 0.0, %v272
      %v275 = vsel %vm268, 0.0, %v273
      %v276 = vld [vmem:[%s3] sm:$0xff]
      %v277 = vld [vmem:[%s3 + $0x8] sm:$0xff]
      %v278 = vld [vmem:[%s3 + $0x10] sm:$0xff]
      %v279 = vld [vmem:[%s3 + $0x18] sm:$0xff]
      %v280 = vld [vmem:[%s3 + $0x20] sm:$0xff]
      %v281 = vld [vmem:[%s3 + $0x28] sm:$0xff]
      %v282 = vld [vmem:[%s3 + $0x30] sm:$0xff]
      %v283 = vld [vmem:[%s3 + $0x38] sm:$0xff]
      %v284 = vld [vmem:[%s3 + $0x40] sm:$0xff]
      %v285 = vld [vmem:[%s3 + $0x48] sm:$0xff]
      %v286 = vld [vmem:[%s3 + $0x50] sm:$0xff]
      %v287 = vld [vmem:[%s3 + $0x58] sm:$0xff]
      %v288 = vld [vmem:[%s3 + $0x60] sm:$0xff]
      %v289 = vld [vmem:[%s3 + $0x68] sm:$0xff]
      %v290 = vld [vmem:[%s3 + $0x70] sm:$0xff]
      %v291 = vld [vmem:[%s3 + $0x78] sm:$0xff]
      %v292 = vld [vmem:[%s3 + $0x80] sm:$0xff]
      %v293 = vld [vmem:[%s3 + $0x88] sm:$0xff]
      %v294 = vld [vmem:[%s3 + $0x90] sm:$0xff]
      %v295 = vld [vmem:[%s3 + $0x98] sm:$0xff]
      %v296 = vld [vmem:[%s3 + $0xa0] sm:$0xff]
      %v297 = vld [vmem:[%s3 + $0xa8] sm:$0xff]
      %v298 = vld [vmem:[%s3 + $0xb0] sm:$0xff]
      %v299 = vld [vmem:[%s3 + $0xb8] sm:$0xff]
      %v300 = vld [vmem:[%s3 + $0xc0] sm:$0xff]
      %v301 = vld [vmem:[%s3 + $0xc8] sm:$0xff]
      %v302 = vld [vmem:[%s3 + $0xd0] sm:$0xff]
      %v303 = vld [vmem:[%s3 + $0xd8] sm:$0xff]
      %v304 = vld [vmem:[%s3 + $0xe0] sm:$0xff]
      %v305 = vld [vmem:[%s3 + $0xe8] sm:$0xff]
      %v306 = vld [vmem:[%s3 + $0xf0] sm:$0xff]
      %v307 = vld [vmem:[%s3 + $0xf8] sm:$0xff]
      %v308 = vld [vmem:[%s3 + $0x100] sm:$0xff]
      %v309 = vld [vmem:[%s3 + $0x108] sm:$0xff]
      %v310 = vld [vmem:[%s3 + $0x110] sm:$0xff]
      %v311 = vld [vmem:[%s3 + $0x118] sm:$0xff]
      %v312 = vld [vmem:[%s3 + $0x120] sm:$0xff]
      %v313 = vld [vmem:[%s3 + $0x128] sm:$0xff]
      %v314 = vld [vmem:[%s3 + $0x130] sm:$0xff]
      %v315 = vld [vmem:[%s3 + $0x138] sm:$0xff]
      %v316 = vld [vmem:[%s3 + $0x140] sm:$0xff]
      %v317 = vld [vmem:[%s3 + $0x148] sm:$0xff]
      %v318 = vld [vmem:[%s3 + $0x150] sm:$0xff]
      %v319 = vld [vmem:[%s3 + $0x158] sm:$0xff]
      %v320 = vld [vmem:[%s3 + $0x160] sm:$0xff]
      %v321 = vld [vmem:[%s3 + $0x168] sm:$0xff]
      %v322 = vld [vmem:[%s3 + $0x170] sm:$0xff]
      %v323 = vld [vmem:[%s3 + $0x178] sm:$0xff]
      %324 = vmatpush.msra.mxu0 %v291
      %325 = vmatpush.msra.mxu0 %v290
      %326 = vmatpush.msra.mxu0 %v289
      %327 = vmatpush.msra.mxu0 %v288
      %328 = vmatpush.msra.mxu0 %v287
      %329 = vmatpush.msra.mxu0 %v286
      %330 = vmatpush.msra.mxu0 %v285
      %331 = vmatpush.msra.mxu0 %v284
      %332 = vmatpush.msra.mxu0 %v283
      %333 = vmatpush.msra.mxu0 %v282
      %334 = vmatpush.msra.mxu0 %v281
      %335 = vmatpush.msra.mxu0 %v280
      %336 = vmatpush.msra.mxu0 %v279
      %337 = vmatpush.msra.mxu0 %v278
      %338 = vmatpush.msra.mxu0 %v277
      %339 = vmatpush.msra.mxu0 %v276
      %340 = vmatmul.f32.gmra.mxu0 %v265
      %v341 = vpop.f32.mrf.mxu0
      %v342 = vadd.f32 0.0, %v341
      %343 = vmatmul.f32.gmra.mxu0 %v266
      %v344 = vpop.f32.mrf.mxu0
      %v345 = vadd.f32 0.0, %v344
      %346 = vdwg.mxu0
      %347 = vmatpush.msra.mxu0 %v307
      %348 = vmatpush.msra.mxu0 %v306
      %349 = vmatpush.msra.mxu0 %v305
      %350 = vmatpush.msra.mxu0 %v304
      %351 = vmatpush.msra.mxu0 %v303
      %352 = vmatpush.msra.mxu0 %v302
      %353 = vmatpush.msra.mxu0 %v301
      %354 = vmatpush.msra.mxu0 %v300
      %355 = vmatpush.msra.mxu0 %v299
      %356 = vmatpush.msra.mxu0 %v298
      %357 = vmatpush.msra.mxu0 %v297
      %358 = vmatpush.msra.mxu0 %v296
      %359 = vmatpush.msra.mxu0 %v295
      %360 = vmatpush.msra.mxu0 %v294
      %361 = vmatpush.msra.mxu0 %v293
      %362 = vmatpush.msra.mxu0 %v292
      %363 = vmatmul.f32.gmra.mxu0 %v253
      %v364 = vpop.f32.mrf.mxu0
      %v365 = vadd.f32 %v342, %v364
      %366 = vmatmul.f32.gmra.mxu0 %v254
      %v367 = vpop.f32.mrf.mxu0
      %v368 = vadd.f32 %v345, %v367
      %369 = vdwg.mxu0
      %370 = vmatpush.msra.mxu0 %v323
      %371 = vmatpush.msra.mxu0 %v322
      %372 = vmatpush.msra.mxu0 %v321
      %373 = vmatpush.msra.mxu0 %v320
      %374 = vmatpush.msra.mxu0 %v319
      %375 = vmatpush.msra.mxu0 %v318
      %376 = vmatpush.msra.mxu0 %v317
      %377 = vmatpush.msra.mxu0 %v316
      %378 = vmatpush.msra.mxu0 %v315
      %379 = vmatpush.msra.mxu0 %v314
      %380 = vmatpush.msra.mxu0 %v313
      %381 = vmatpush.msra.mxu0 %v312
      %382 = vmatpush.msra.mxu0 %v311
      %383 = vmatpush.msra.mxu0 %v310
      %384 = vmatpush.msra.mxu0 %v309
      %385 = vmatpush.msra.mxu0 %v308
      %386 = vmatmul.f32.gmra.mxu0 %v274
      %v387 = vpop.f32.mrf.mxu0
      %v388 = vadd.f32 %v365, %v387
      %389 = vmatmul.f32.gmra.mxu0 %v275
      %v390 = vpop.f32.mrf.mxu0
      %v391 = vadd.f32 %v368, %v390
      %392 = vdwg.mxu0
      %393 = vst [vmem:[%s233] sm:$0xff] %v388
      %394 = vst [vmem:[%s233 + $0x8] sm:$0xff] %v391
      %v395 = vadd.f32 %v388, %v391
      %v396 = vrot.slane %v395, 4
      %v397 = vadd.f32 %v395, %v396
      %v398 = vrot.slane %v397, 2
      %v399 = vadd.f32 %v397, %v398
      %v400 = vrot.slane %v399, 1
      %v401 = vadd.f32 %v399, %v400
      %v402 = vmul.f32 %v388, %v388
      %v403 = vmul.f32 %v391, %v391
      %v404 = vadd.f32 %v402, %v403
      %v405 = vrot.slane %v404, 4
      %v406 = vadd.f32 %v404, %v405
      %v407 = vrot.slane %v406, 2
      %v408 = vadd.f32 %v406, %v407
      %v409 = vrot.slane %v408, 1
      %v410 = vadd.f32 %v408, %v409
      %vm411 = vcmask 1040384
      %v412 = vsel %vm411, %v401, %v410
      %413 = vst [vmem:[%s238] sm:$0x3] %v412
      %s414 = smul.u32 2, %s17
      %p415 = scmp.lt.s32.totalorder %s414, 3
      %s416 = scalar_select %p415, %s414, 3
      %s417 = smul.addr %s416, 8
      %s418 = scalar_lea.vmem %s4, %s417
      %p419 = scmp.lt.s32.totalorder %s17, 1
      %s420 = scalar_select %p419, %s17, 1
      %s421 = smul.addr %s420, 2
      %s422 = scalar_lea.vmem %s5, %s421
      // Predicated region
      $region37: #{nested_block_nhwc.4} parent=35 // pred_check
        %p423 = pneg %p124
      $region38: #{nested_block_nhwc.4} parent=35 // pred_check_branch
        %425 = sbr.rel (%p423) target = $region40
      $region39: #{nested_block_nhwc.4} parent=35 // pred_region
        %s426 = smul.u32 2, %s17
      $region40: #{nested_block_nhwc.4} parent=35 // pred_fallthru
        _
      // Predicated region
      $region41: #{nested_block_nhwc.4} parent=35 // pred_check
        %p427 = pneg %p150
      $region42: #{nested_block_nhwc.4} parent=35 // pred_check_branch
        %429 = sbr.rel (%p427) target = $region44
      $region43: #{nested_block_nhwc.4} parent=35 // pred_region
        _
      $region44: #{nested_block_nhwc.4} parent=35 // pred_fallthru
        _
    $region36: #{nested_block_nhwc.4} parent=5 // pred_fallthru
      _
    %p430 = scmp.le.s32.totalorder 2, %s12
    // Predicated region
    $region45: #{nested_block_nhwc.4} parent=5 // pred_check
      %p431 = pneg %p430
    $region46: #{nested_block_nhwc.4} parent=5 // pred_check_branch
      %433 = sbr.rel (%p431) target = $region48
    $region47: #{nested_block_nhwc.4} parent=5 // pred_region
      %s434 = ssub.s32 %s12, 2
      // Predicated region
      $region49: #{nested_block_nhwc.4} parent=47 // pred_check
        %p435 = pneg %p130
      $region50: #{nested_block_nhwc.4} parent=47 // pred_check_branch
        %437 = sbr.rel (%p435) target = $region52
      $region51: #{nested_block_nhwc.4} parent=47 // pred_region
        %s438 = smul.u32 2, %s18
        %p439 = scmp.lt.s32.totalorder %s438, 3
        %s440 = scalar_select %p439, %s438, 3
        %s441 = smul.addr %s440, 8
        %s442 = scalar_lea.vmem %s4, %s441
      $region52: #{nested_block_nhwc.4} parent=47 // pred_fallthru
        _
      // Predicated region
      $region53: #{nested_block_nhwc.4} parent=47 // pred_check
        %p443 = pneg %p156
      $region54: #{nested_block_nhwc.4} parent=47 // pred_check_branch
        %445 = sbr.rel (%p443) target = $region56
      $region55: #{nested_block_nhwc.4} parent=47 // pred_region
        %p446 = scmp.lt.s32.totalorder %s18, 1
        %s447 = scalar_select %p446, %s18, 1
        %s448 = smul.addr %s447, 2
        %s449 = scalar_lea.vmem %s5, %s448
      $region56: #{nested_block_nhwc.4} parent=47 // pred_fallthru
        _
    $region48: #{nested_block_nhwc.4} parent=5 // pred_fallthru
      _
  $region6: #{nested_block_nhwc.4} parent=0 // loop_footer
    %s16 = sadd.s32 1, %s12
  $region7: #{nested_block_nhwc.4} parent=0 // loop_footer_branch
    %11 = sbr.rel target = $region3
  $region8: #{nested_block_nhwc.4} parent=0 // loop_exit
    _

</llo_original>
